<compile_context>
chip_gen: v5e
topology: v5e:2x2
jax: 0.10.0
libtpu: 0.0.40
codegen_flags: <defaults>
</compile_context>

<pallas_src>
import jax
import jax.numpy as jnp
from jax import lax
from jax.experimental import pallas as pl
from jax.experimental.pallas import tpu as pltpu

LANE = 128  # padded lane width for im2col depth / features / classifier scores


# ----------------------------- Pallas kernels ------------------------------

def _backbone_head_kernel(patch_ref, convw_ref, convb_ref, clsw_ref, clsb_ref,
                          pw1_ref, pb1_ref, pw2_ref, pb2_ref,
                          feat_ref, cls_ref, rep_ref):
    """im2col-conv(+bias,ReLU) + GAP + classifier + projection head, Nb images."""
    nb, hw, kp = patch_ref.shape
    fp = convw_ref.shape[1]
    # One big lane-dense matmul: (Nb*HW, 128) x (128, 128), bf16 in / f32 acc.
    pm = patch_ref[...].reshape(nb * hw, kp).astype(jnp.bfloat16)
    y = jnp.dot(pm, convw_ref[...], preferred_element_type=jnp.float32) + convb_ref[...]
    y = jnp.maximum(y, 0.0)
    # Per-image global average pool (sublane reduction inside each image slab).
    feat = jnp.mean(y.reshape(nb, hw, fp), axis=1)                    # (nb, fp) f32
    feat_ref[...] = feat.reshape(feat_ref.shape)
    fb = feat.astype(jnp.bfloat16)
    # Classifier (feat already resident in vregs).
    cls = jnp.dot(fb, clsw_ref[...], preferred_element_type=jnp.float32) + clsb_ref[...]
    cls_ref[...] = cls.reshape(cls_ref.shape)
    # Projection head fused in: Linear -> ReLU -> Linear -> L2-norm (row-wise).
    h = jnp.maximum(jnp.dot(fb, pw1_ref[...], preferred_element_type=jnp.float32)
                    + pb1_ref[...], 0.0)
    r = jnp.dot(h.astype(jnp.bfloat16), pw2_ref[...],
                preferred_element_type=jnp.float32) + pb2_ref[...]
    ss = jnp.sum(r * r, axis=1, keepdims=True)
    # x / clamp_min(||x||, 1e-12)  ==  x * rsqrt(clamp_min(||x||^2, 1e-24))
    rep_ref[...] = (r * lax.rsqrt(jnp.maximum(ss, 1e-24))).reshape(rep_ref.shape)


def _jig_kernel(ids_ref, x_ref, w1_ref, b1_ref, w2_ref, b2_ref, w3_ref, b3_ref,
                o_ref):
    """JigsawHead: fc1 -> shuffle (one-hot gather matmul) -> view -> fc2 -> L2norm."""
    bsz = x_ref.shape[0]
    k = w3_ref.shape[0]
    n_img = bsz // k
    do = w2_ref.shape[1]
    # fc1: Linear -> ReLU -> Linear (weights already bf16 in VMEM).
    h = jnp.dot(x_ref[...].astype(jnp.bfloat16), w1_ref[...],
                preferred_element_type=jnp.float32) + b1_ref[...]
    h = jnp.maximum(h, 0.0)
    h = jnp.dot(h.astype(jnp.bfloat16), w2_ref[...],
                preferred_element_type=jnp.float32) + b2_ref[...]      # (bsz, do)
    hb = h.astype(jnp.bfloat16)

    # x[shuffle_ids].view(n_img, k*do) @ W2 == sum_p onehot_p @ h @ W2[p]
    # ids_ref is pre-arranged per position: ids_ref[p, i, 0] = shuffle_ids[i*k+p].
    col = lax.broadcasted_iota(jnp.int32, (n_img, bsz), 1)
    acc = jnp.zeros((n_img, do), jnp.float32)
    for p in range(k):                                  # k is small & static
        sel = jnp.where(col == ids_ref[p], 1.0, 0.0).astype(jnp.bfloat16)
        gp = jnp.dot(sel, hb, preferred_element_type=jnp.float32)      # exact gather
        acc = acc + jnp.dot(gp.astype(jnp.bfloat16), w3_ref[p],
                            preferred_element_type=jnp.float32)
    y = acc + b3_ref[...]
    ss = jnp.sum(y * y, axis=1, keepdims=True)
    o_ref[...] = y * lax.rsqrt(jnp.maximum(ss, 1e-24))


# ------------------------------ kernel wrappers -----------------------------

def _im2col_pad(x_nchw, k_pad):
    """NCHW -> lane-dense (N, H*W, k_pad) im2col patches, materialized once."""
    N, C, H, W = x_nchw.shape
    xh = jnp.transpose(x_nchw, (0, 2, 3, 1))
    xp = jnp.pad(xh, ((0, 0), (1, 1), (1, 1), (0, 0)))
    taps = [xp[:, di:di + H, dj:dj + W, :] for di in range(3) for dj in range(3)]
    patches = jnp.concatenate(taps, axis=-1).reshape(N, H * W, 9 * C)
    return jnp.pad(patches, ((0, 0), (0, 0), (0, k_pad - 9 * C)))


def fused_backbone_head(params, x_nchw):
    """Synthetic backbone + classifier + projection head (all images, one call)."""
    N, C, H, W = x_nchw.shape
    HW = H * W
    Kp, Fp = params["conv_w"].shape
    Cp = params["cls_w"].shape[1]
    Dp = params["head_w2"].shape[1]
    patches = _im2col_pad(x_nchw, Kp)                   # (N, HW, 128) f32
    nblk = 2 if (N % 2 == 0 and N >= 2) else 1          # 2 parallel steps -> v7x 2 TCs
    nb = N // nblk

    flops = 2 * N * (HW * Kp * Fp + Fp * (Cp + Fp + Dp))
    bytes_accessed = (4 * N * HW * Kp
                      + 2 * (Kp * Fp + Fp * Cp + Fp * Fp + Fp * Dp)
                      + 4 * (Fp + Cp + Fp + Dp)
                      + 4 * N * (Fp + Cp + Dp))
    # TODO(synk): at real backbone shapes re-derive nb against v7x's 32 MiB
    # scoped VMEM and set vmem_limit_bytes explicitly.
    feat, cls, rep = pl.pallas_call(
        _backbone_head_kernel,
        out_shape=(jax.ShapeDtypeStruct((nblk, nb, Fp), jnp.float32),
                   jax.ShapeDtypeStruct((nblk, nb, Cp), jnp.float32),
                   jax.ShapeDtypeStruct((nblk, nb, Dp), jnp.float32)),
        grid=(nblk,),
        in_specs=[
            pl.BlockSpec((nb, HW, Kp), lambda i: (i, 0, 0)),
            pl.BlockSpec((Kp, Fp), lambda i: (0, 0)),
            pl.BlockSpec((1, Fp), lambda i: (0, 0)),
            pl.BlockSpec((Fp, Cp), lambda i: (0, 0)),
            pl.BlockSpec((1, Cp), lambda i: (0, 0)),
            pl.BlockSpec((Fp, Fp), lambda i: (0, 0)),
            pl.BlockSpec((1, Fp), lambda i: (0, 0)),
            pl.BlockSpec((Fp, Dp), lambda i: (0, 0)),
            pl.BlockSpec((1, Dp), lambda i: (0, 0)),
        ],
        out_specs=(
            pl.BlockSpec((1, nb, Fp), lambda i: (i, 0, 0)),
            pl.BlockSpec((1, nb, Cp), lambda i: (i, 0, 0)),
            pl.BlockSpec((1, nb, Dp), lambda i: (i, 0, 0)),
        ),
        compiler_params=pltpu.CompilerParams(dimension_semantics=("parallel",)),
        cost_estimate=pl.CostEstimate(flops=flops, transcendentals=N,
                                      bytes_accessed=bytes_accessed),
    )(patches, params["conv_w"], params["conv_b"],
      params["cls_w"], params["cls_b"],
      params["head_w1"], params["head_b1"], params["head_w2"], params["head_b2"])
    return feat.reshape(N, Fp), cls.reshape(N, Cp), rep.reshape(N, Dp)


def fused_jigsaw(params, feat_jig, shuffle_ids, k):
    bsz, Fp = feat_jig.shape
    n_img = bsz // k
    Do = params["jig_fc1_w2"].shape[1]
    # Pre-arrange ids per shuffle position: ids_by_pos[p, i] = shuffle_ids[i*k+p].
    ids_by_pos = shuffle_ids.reshape(n_img, k).T.reshape(k, n_img, 1).astype(jnp.int32)
    return pl.pallas_call(
        _jig_kernel,
        out_shape=jax.ShapeDtypeStruct((n_img, Do), jnp.float32),
        grid=(1,),
        in_specs=[
            pl.BlockSpec((k, n_img, 1), lambda i: (0, 0, 0)),
            pl.BlockSpec((bsz, Fp), lambda i: (0, 0)),
            pl.BlockSpec((Fp, Fp), lambda i: (0, 0)),
            pl.BlockSpec((1, Fp), lambda i: (0, 0)),
            pl.BlockSpec((Fp, Do), lambda i: (0, 0)),
            pl.BlockSpec((1, Do), lambda i: (0, 0)),
            pl.BlockSpec((k, Do, Do), lambda i: (0, 0, 0)),
            pl.BlockSpec((1, Do), lambda i: (0, 0)),
        ],
        out_specs=pl.BlockSpec((n_img, Do), lambda i: (0, 0)),
        compiler_params=pltpu.CompilerParams(dimension_semantics=("arbitrary",)),
    )(ids_by_pos, feat_jig,
      params["jig_fc1_w1"], params["jig_fc1_b1"],
      params["jig_fc1_w2"], params["jig_fc1_b2"],
      params["jig_fc2_w"], params["jig_fc2_b"])


# ------------------------------- forward pass -------------------------------

def get_shuffle_ids(key, bsz, k):
    """Deterministic, vmapped JAX analogue of JigsawHead.get_shuffle_ids."""
    n_img = bsz // k
    keys = jax.random.split(key, n_img)
    rnd_ids = jax.vmap(lambda kk: jax.random.permutation(kk, k))(keys).reshape(-1)
    base_ids = (jnp.arange(bsz) // k) * k
    return (rnd_ids + base_ids).astype(jnp.int32)


def forward(params, x, x_jig=None, train=False, shuffle_key=None, k=4,
            num_classes=10):
    if not train:
        _, cls, _ = fused_backbone_head(params, x)
        return cls[:, :num_classes]

    B = x.shape[0]
    # Single backbone launch for x and x_jig (split 2-way across TCs on v7x).
    x_all = jnp.concatenate([x, x_jig], axis=0)
    feat_all, cls_all, rep_all = fused_backbone_head(params, x_all)
    classification_scores = cls_all[:B, :num_classes]
    representation = rep_all[:B]                     # head output for x rows only
    feat_jig = feat_all[B:]

    bsz = x_jig.shape[0]
    shuffle_ids = get_shuffle_ids(shuffle_key, bsz, k)
    representation_jig = fused_jigsaw(params, feat_jig, shuffle_ids, k)
    return classification_scores, representation, representation_jig


# ---------------------------- parameter setup ------------------------------

def init_params(key, c_in=4, feat_dim=32, num_classes=10, dim_out=128, k=4):
    """Init at logical (PyTorch) shapes, zero-pad lane dims to 128, bf16 weights."""
    keys = jax.random.split(key, 14)

    def u(k_, shape, fan_in):
        bound = 1.0 / float(fan_in) ** 0.5
        return jax.random.uniform(k_, shape, jnp.float32, -bound, bound)

    def pad(a, shape):
        return jnp.pad(a, [(0, s - d) for d, s in zip(a.shape, shape)])

    p = {}
    kc = 9 * c_in
    # synthetic backbone conv as a flat im2col matmul weight: (9*C -> 128, feat -> 128)
    p["conv_w"] = pad(u(keys[0], (kc, feat_dim), kc), (LANE, LANE)).astype(jnp.bfloat16)
    p["conv_b"] = pad(u(keys[1], (1, feat_dim), kc), (1, LANE))
    # cls_classifier: Linear(feat_dim -> num_classes), padded to 128x128
    p["cls_w"] = pad(u(keys[2], (feat_dim, num_classes), feat_dim),
                     (LANE, LANE)).astype(jnp.bfloat16)
    p["cls_b"] = pad(u(keys[3], (1, num_classes), feat_dim), (1, LANE))
    # head: Linear(D,D) -> ReLU -> Linear(D,128)
    p["head_w1"] = pad(u(keys[4], (feat_dim, feat_dim), feat_dim),
                       (LANE, LANE)).astype(jnp.bfloat16)
    p["head_b1"] = pad(u(keys[5], (1, feat_dim), feat_dim), (1, LANE))
    p["head_w2"] = pad(u(keys[6], (feat_dim, dim_out), feat_dim),
                       (LANE, dim_out)).astype(jnp.bfloat16)
    p["head_b2"] = u(keys[7], (1, dim_out), feat_dim)
    # hed_jig.fc1: Linear(D,D) -> ReLU -> Linear(D,128)
    p["jig_fc1_w1"] = pad(u(keys[8], (feat_dim, feat_dim), feat_dim),
                          (LANE, LANE)).astype(jnp.bfloat16)
    p["jig_fc1_b1"] = pad(u(keys[9], (1, feat_dim), feat_dim), (1, LANE))
    p["jig_fc1_w2"] = pad(u(keys[10], (feat_dim, dim_out), feat_dim),
                          (LANE, dim_out)).astype(jnp.bfloat16)
    p["jig_fc1_b2"] = u(keys[11], (1, dim_out), feat_dim)
    # hed_jig.fc2: Linear(128*k, 128), stored per shuffle position: (k, 128, 128)
    p["jig_fc2_w"] = u(keys[12], (dim_out * k, dim_out),
                       dim_out * k).reshape(k, dim_out, dim_out).astype(jnp.bfloat16)
    p["jig_fc2_b"] = u(keys[13], (1, dim_out), dim_out * k)
    return p


if __name__ == "__main__":
    key = jax.random.PRNGKey(0)
    kp, kx, kj, ks = jax.random.split(key, 4)

    params = init_params(kp)
    x = jax.random.normal(kx, (2, 4, 16, 16), jnp.float32)      # NCHW
    x_jig = jax.random.normal(kj, (8, 4, 16, 16), jnp.float32)  # NCHW, bsz = 2*k

    fwd = jax.jit(lambda p, a, b, kk: forward(p, a, b, train=True,
                                              shuffle_key=kk, k=4, num_classes=10))
    cls, rep, rep_jig = fwd(params, x, x_jig, ks)
    jax.block_until_ready((cls, rep, rep_jig))

    fwd_eval = jax.jit(lambda p, a: forward(p, a, train=False, num_classes=10))
    scores = fwd_eval(params, x)
    jax.block_until_ready(scores)

    assert cls.shape == (2, 10)
    assert rep.shape == (2, 128)
    assert rep_jig.shape == (2, 128)
    assert scores.shape == (2, 10)
    print("KERNEL_OK")
</pallas_src>

<mosaic_0001>
module attributes {stable_mosaic.version = 11 : i64} {
  func.func @_backbone_head_kernel(%arg0: i32, %arg1: memref<5x256x128xf32, #tpu.memory_space<vmem>>, %arg2: memref<128x128xbf16, #tpu.memory_space<vmem>>, %arg3: memref<1x128xf32, #tpu.memory_space<vmem>>, %arg4: memref<128x128xbf16, #tpu.memory_space<vmem>>, %arg5: memref<1x128xf32, #tpu.memory_space<vmem>>, %arg6: memref<128x128xbf16, #tpu.memory_space<vmem>>, %arg7: memref<1x128xf32, #tpu.memory_space<vmem>>, %arg8: memref<128x128xbf16, #tpu.memory_space<vmem>>, %arg9: memref<1x128xf32, #tpu.memory_space<vmem>>, %arg10: memref<1x5x128xf32, #tpu.memory_space<vmem>>, %arg11: memref<1x5x128xf32, #tpu.memory_space<vmem>>, %arg12: memref<1x5x128xf32, #tpu.memory_space<vmem>>) attributes {dimension_semantics = [#tpu.dimension_semantics<parallel>], iteration_bounds = array<i64: 2>, scalar_prefetch = 0 : i64, scratch_operands = 0 : i64, tpu.core_type = #tpu.core_type<tc>, window_params = [{transform_indices = @transform_0, window_bounds = array<i64: 5, 256, 128>}, {pipeline_mode = #tpu.pipeline_mode<synchronous>, transform_indices = @transform_1, window_bounds = array<i64: 128, 128>}, {pipeline_mode = #tpu.pipeline_mode<synchronous>, transform_indices = @transform_2, window_bounds = array<i64: 1, 128>}, {pipeline_mode = #tpu.pipeline_mode<synchronous>, transform_indices = @transform_3, window_bounds = array<i64: 128, 128>}, {pipeline_mode = #tpu.pipeline_mode<synchronous>, transform_indices = @transform_4, window_bounds = array<i64: 1, 128>}, {pipeline_mode = #tpu.pipeline_mode<synchronous>, transform_indices = @transform_5, window_bounds = array<i64: 128, 128>}, {pipeline_mode = #tpu.pipeline_mode<synchronous>, transform_indices = @transform_6, window_bounds = array<i64: 1, 128>}, {pipeline_mode = #tpu.pipeline_mode<synchronous>, transform_indices = @transform_7, window_bounds = array<i64: 128, 128>}, {pipeline_mode = #tpu.pipeline_mode<synchronous>, transform_indices = @transform_8, window_bounds = array<i64: 1, 128>}, {transform_indices = @transform_9, window_bounds = array<i64: 1, 5, 128>}, {transform_indices = @transform_10, window_bounds = array<i64: 1, 5, 128>}, {transform_indices = @transform_11, window_bounds = array<i64: 1, 5, 128>}]} {
    %c0 = arith.constant 0 : index
    %c0_0 = arith.constant 0 : index
    %c0_1 = arith.constant 0 : index
    %0 = vector.load %arg1[%c0, %c0_0, %c0_1] : memref<5x256x128xf32, #tpu.memory_space<vmem>>, vector<5x256x128xf32>
    %1 = vector.shape_cast %0 : vector<5x256x128xf32> to vector<1280x128xf32>
    %2 = arith.truncf %1 : vector<1280x128xf32> to vector<1280x128xbf16>
    %c0_2 = arith.constant 0 : index
    %c0_3 = arith.constant 0 : index
    %3 = vector.load %arg2[%c0_2, %c0_3] : memref<128x128xbf16, #tpu.memory_space<vmem>>, vector<128x128xbf16>
    %cst = arith.constant dense<0.000000e+00> : vector<1280x128xf32>
    %4 = tpu.matmul %2, %3, %cst {dimension_numbers = #tpu.dot_dimension_numbers<[1], [0], [0], [1], [0, 0, 1, 1], [], []>} : vector<1280x128xbf16>, vector<128x128xbf16>, vector<1280x128xf32> -> vector<1280x128xf32>
    %c0_4 = arith.constant 0 : index
    %c0_5 = arith.constant 0 : index
    %5 = vector.load %arg3[%c0_4, %c0_5] : memref<1x128xf32, #tpu.memory_space<vmem>>, vector<1x128xf32>
    %6 = vector.broadcast %5 : vector<1x128xf32> to vector<1280x128xf32>
    %7 = arith.addf %4, %6 : vector<1280x128xf32>
    %cst_6 = arith.constant 0.000000e+00 : f32
    %8 = vector.broadcast %cst_6 : f32 to vector<1280x128xf32>
    %9 = arith.maximumf %7, %8 : vector<1280x128xf32>
    %10 = vector.shape_cast %9 : vector<1280x128xf32> to vector<5x256x128xf32>
    %cst_7 = arith.constant dense<0.000000e+00> : vector<5x128xf32>
    %11 = vector.multi_reduction <add>, %10, %cst_7 [1] : vector<5x256x128xf32> to vector<5x128xf32>
    %cst_8 = arith.constant 2.560000e+02 : f32
    %12 = vector.broadcast %cst_8 : f32 to vector<5x128xf32>
    %13 = arith.divf %11, %12 : vector<5x128xf32>
    %14 = vector.shape_cast %13 : vector<5x128xf32> to vector<1x5x128xf32>
    %c0_9 = arith.constant 0 : index
    %c0_10 = arith.constant 0 : index
    %c0_11 = arith.constant 0 : index
    %15 = vector.load %arg10[%c0_9, %c0_10, %c0_11] : memref<1x5x128xf32, #tpu.memory_space<vmem>>, vector<1x5x128xf32>
    tpu.vector_store %arg10[%c0_9, %c0_10, %c0_11], %14 {strides = array<i32>} : memref<1x5x128xf32, #tpu.memory_space<vmem>>, vector<1x5x128xf32>,
    %16 = arith.truncf %13 : vector<5x128xf32> to vector<5x128xbf16>
    %c0_12 = arith.constant 0 : index
    %c0_13 = arith.constant 0 : index
    %17 = vector.load %arg4[%c0_12, %c0_13] : memref<128x128xbf16, #tpu.memory_space<vmem>>, vector<128x128xbf16>
    %cst_14 = arith.constant dense<0.000000e+00> : vector<5x128xf32>
    %18 = tpu.matmul %16, %17, %cst_14 {dimension_numbers = #tpu.dot_dimension_numbers<[1], [0], [0], [1], [0, 0, 1, 1], [], []>} : vector<5x128xbf16>, vector<128x128xbf16>, vector<5x128xf32> -> vector<5x128xf32>
    %c0_15 = arith.constant 0 : index
    %c0_16 = arith.constant 0 : index
    %19 = vector.load %arg5[%c0_15, %c0_16] : memref<1x128xf32, #tpu.memory_space<vmem>>, vector<1x128xf32>
    %20 = vector.broadcast %19 : vector<1x128xf32> to vector<5x128xf32>
    %21 = arith.addf %18, %20 : vector<5x128xf32>
    %22 = vector.shape_cast %21 : vector<5x128xf32> to vector<1x5x128xf32>
    %c0_17 = arith.constant 0 : index
    %c0_18 = arith.constant 0 : index
    %c0_19 = arith.constant 0 : index
    %23 = vector.load %arg11[%c0_17, %c0_18, %c0_19] : memref<1x5x128xf32, #tpu.memory_space<vmem>>, vector<1x5x128xf32>
    tpu.vector_store %arg11[%c0_17, %c0_18, %c0_19], %22 {strides = array<i32>} : memref<1x5x128xf32, #tpu.memory_space<vmem>>, vector<1x5x128xf32>,
    %c0_20 = arith.constant 0 : index
    %c0_21 = arith.constant 0 : index
    %24 = vector.load %arg6[%c0_20, %c0_21] : memref<128x128xbf16, #tpu.memory_space<vmem>>, vector<128x128xbf16>
    %cst_22 = arith.constant dense<0.000000e+00> : vector<5x128xf32>
    %25 = tpu.matmul %16, %24, %cst_22 {dimension_numbers = #tpu.dot_dimension_numbers<[1], [0], [0], [1], [0, 0, 1, 1], [], []>} : vector<5x128xbf16>, vector<128x128xbf16>, vector<5x128xf32> -> vector<5x128xf32>
    %c0_23 = arith.constant 0 : index
    %c0_24 = arith.constant 0 : index
    %26 = vector.load %arg7[%c0_23, %c0_24] : memref<1x128xf32, #tpu.memory_space<vmem>>, vector<1x128xf32>
    %27 = vector.broadcast %26 : vector<1x128xf32> to vector<5x128xf32>
    %28 = arith.addf %25, %27 : vector<5x128xf32>
    %cst_25 = arith.constant 0.000000e+00 : f32
    %29 = vector.broadcast %cst_25 : f32 to vector<5x128xf32>
    %30 = arith.maximumf %28, %29 : vector<5x128xf32>
    %31 = arith.truncf %30 : vector<5x128xf32> to vector<5x128xbf16>
    %c0_26 = arith.constant 0 : index
    %c0_27 = arith.constant 0 : index
    %32 = vector.load %arg8[%c0_26, %c0_27] : memref<128x128xbf16, #tpu.memory_space<vmem>>, vector<128x128xbf16>
    %cst_28 = arith.constant dense<0.000000e+00> : vector<5x128xf32>
    %33 = tpu.matmul %31, %32, %cst_28 {dimension_numbers = #tpu.dot_dimension_numbers<[1], [0], [0], [1], [0, 0, 1, 1], [], []>} : vector<5x128xbf16>, vector<128x128xbf16>, vector<5x128xf32> -> vector<5x128xf32>
    %c0_29 = arith.constant 0 : index
    %c0_30 = arith.constant 0 : index
    %34 = vector.load %arg9[%c0_29, %c0_30] : memref<1x128xf32, #tpu.memory_space<vmem>>, vector<1x128xf32>
    %35 = vector.broadcast %34 : vector<1x128xf32> to vector<5x128xf32>
    %36 = arith.addf %33, %35 : vector<5x128xf32>
    %37 = arith.mulf %36, %36 : vector<5x128xf32>
    %cst_31 = arith.constant dense<0.000000e+00> : vector<5xf32>
    %38 = vector.multi_reduction <add>, %37, %cst_31 [1] : vector<5x128xf32> to vector<5xf32>
    %39 = vector.shape_cast %38 : vector<5xf32> to vector<5x1xf32>
    %cst_32 = arith.constant 1.000000e-24 : f32
    %40 = vector.broadcast %cst_32 : f32 to vector<5x1xf32>
    %41 = arith.maximumf %39, %40 : vector<5x1xf32>
    %42 = math.rsqrt %41 : vector<5x1xf32>
    %43 = vector.broadcast %42 : vector<5x1xf32> to vector<5x128xf32>
    %44 = arith.mulf %36, %43 : vector<5x128xf32>
    %45 = vector.shape_cast %44 : vector<5x128xf32> to vector<1x5x128xf32>
    %c0_33 = arith.constant 0 : index
    %c0_34 = arith.constant 0 : index
    %c0_35 = arith.constant 0 : index
    %46 = vector.load %arg12[%c0_33, %c0_34, %c0_35] : memref<1x5x128xf32, #tpu.memory_space<vmem>>, vector<1x5x128xf32>
    tpu.vector_store %arg12[%c0_33, %c0_34, %c0_35], %45 {strides = array<i32>} : memref<1x5x128xf32, #tpu.memory_space<vmem>>, vector<1x5x128xf32>,
    return
  }
  func.func @transform_0(%arg0: i32) -> (i32, i32, i32) {
    %c0_i32 = arith.constant 0 : i32
    %c0_i32_0 = arith.constant 0 : i32
    %c0_i32_1 = arith.constant 0 : i32
    return %arg0, %c0_i32, %c0_i32_0 : i32, i32, i32
  }
  func.func @transform_1(%arg0: i32) -> (i32, i32) {
    %c0_i32 = arith.constant 0 : i32
    %c0_i32_0 = arith.constant 0 : i32
    %c0_i32_1 = arith.constant 0 : i32
    return %c0_i32, %c0_i32_0 : i32, i32
  }
  func.func @transform_2(%arg0: i32) -> (i32, i32) {
    %c0_i32 = arith.constant 0 : i32
    %c0_i32_0 = arith.constant 0 : i32
    %c0_i32_1 = arith.constant 0 : i32
    return %c0_i32, %c0_i32_0 : i32, i32
  }
  func.func @transform_3(%arg0: i32) -> (i32, i32) {
    %c0_i32 = arith.constant 0 : i32
    %c0_i32_0 = arith.constant 0 : i32
    %c0_i32_1 = arith.constant 0 : i32
    return %c0_i32, %c0_i32_0 : i32, i32
  }
  func.func @transform_4(%arg0: i32) -> (i32, i32) {
    %c0_i32 = arith.constant 0 : i32
    %c0_i32_0 = arith.constant 0 : i32
    %c0_i32_1 = arith.constant 0 : i32
    return %c0_i32, %c0_i32_0 : i32, i32
  }
  func.func @transform_5(%arg0: i32) -> (i32, i32) {
    %c0_i32 = arith.constant 0 : i32
    %c0_i32_0 = arith.constant 0 : i32
    %c0_i32_1 = arith.constant 0 : i32
    return %c0_i32, %c0_i32_0 : i32, i32
  }
  func.func @transform_6(%arg0: i32) -> (i32, i32) {
    %c0_i32 = arith.constant 0 : i32
    %c0_i32_0 = arith.constant 0 : i32
    %c0_i32_1 = arith.constant 0 : i32
    return %c0_i32, %c0_i32_0 : i32, i32
  }
  func.func @transform_7(%arg0: i32) -> (i32, i32) {
    %c0_i32 = arith.constant 0 : i32
    %c0_i32_0 = arith.constant 0 : i32
    %c0_i32_1 = arith.constant 0 : i32
    return %c0_i32, %c0_i32_0 : i32, i32
  }
  func.func @transform_8(%arg0: i32) -> (i32, i32) {
    %c0_i32 = arith.constant 0 : i32
    %c0_i32_0 = arith.constant 0 : i32
    %c0_i32_1 = arith.constant 0 : i32
    return %c0_i32, %c0_i32_0 : i32, i32
  }
  func.func @transform_9(%arg0: i32) -> (i32, i32, i32) {
    %c0_i32 = arith.constant 0 : i32
    %c0_i32_0 = arith.constant 0 : i32
    %c0_i32_1 = arith.constant 0 : i32
    return %arg0, %c0_i32, %c0_i32_0 : i32, i32, i32
  }
  func.func @transform_10(%arg0: i32) -> (i32, i32, i32) {
    %c0_i32 = arith.constant 0 : i32
    %c0_i32_0 = arith.constant 0 : i32
    %c0_i32_1 = arith.constant 0 : i32
    return %arg0, %c0_i32, %c0_i32_0 : i32, i32, i32
  }
  func.func @transform_11(%arg0: i32) -> (i32, i32, i32) {
    %c0_i32 = arith.constant 0 : i32
    %c0_i32_0 = arith.constant 0 : i32
    %c0_i32_1 = arith.constant 0 : i32
    return %arg0, %c0_i32, %c0_i32_0 : i32, i32, i32
  }
}

module attributes {stable_mosaic.version = 11 : i64} {
  func.func @_jig_kernel(%arg0: i32, %arg1: memref<4x2x1xi32, #tpu.memory_space<vmem>>, %arg2: memref<8x128xf32, #tpu.memory_space<vmem>>, %arg3: memref<128x128xbf16, #tpu.memory_space<vmem>>, %arg4: memref<1x128xf32, #tpu.memory_space<vmem>>, %arg5: memref<128x128xbf16, #tpu.memory_space<vmem>>, %arg6: memref<1x128xf32, #tpu.memory_space<vmem>>, %arg7: memref<4x128x128xbf16, #tpu.memory_space<vmem>>, %arg8: memref<1x128xf32, #tpu.memory_space<vmem>>, %arg9: memref<2x128xf32, #tpu.memory_space<vmem>>) attributes {dimension_semantics = [#tpu.dimension_semantics<arbitrary>], iteration_bounds = array<i64: 1>, scalar_prefetch = 0 : i64, scratch_operands = 0 : i64, tpu.core_type = #tpu.core_type<tc>, window_params = [{pipeline_mode = #tpu.pipeline_mode<synchronous>, transform_indices = @transform_0, window_bounds = array<i64: 4, 2, 1>}, {pipeline_mode = #tpu.pipeline_mode<synchronous>, transform_indices = @transform_1, window_bounds = array<i64: 8, 128>}, {pipeline_mode = #tpu.pipeline_mode<synchronous>, transform_indices = @transform_2, window_bounds = array<i64: 128, 128>}, {pipeline_mode = #tpu.pipeline_mode<synchronous>, transform_indices = @transform_3, window_bounds = array<i64: 1, 128>}, {pipeline_mode = #tpu.pipeline_mode<synchronous>, transform_indices = @transform_4, window_bounds = array<i64: 128, 128>}, {pipeline_mode = #tpu.pipeline_mode<synchronous>, transform_indices = @transform_5, window_bounds = array<i64: 1, 128>}, {pipeline_mode = #tpu.pipeline_mode<synchronous>, transform_indices = @transform_6, window_bounds = array<i64: 4, 128, 128>}, {pipeline_mode = #tpu.pipeline_mode<synchronous>, transform_indices = @transform_7, window_bounds = array<i64: 1, 128>}, {pipeline_mode = #tpu.pipeline_mode<synchronous>, transform_indices = @transform_8, window_bounds = array<i64: 2, 128>}]} {
    %c0 = arith.constant 0 : index
    %c0_0 = arith.constant 0 : index
    %0 = vector.load %arg2[%c0, %c0_0] : memref<8x128xf32, #tpu.memory_space<vmem>>, vector<8x128xf32>
    %1 = arith.truncf %0 : vector<8x128xf32> to vector<8x128xbf16>
    %c0_1 = arith.constant 0 : index
    %c0_2 = arith.constant 0 : index
    %2 = vector.load %arg3[%c0_1, %c0_2] : memref<128x128xbf16, #tpu.memory_space<vmem>>, vector<128x128xbf16>
    %cst = arith.constant dense<0.000000e+00> : vector<8x128xf32>
    %3 = tpu.matmul %1, %2, %cst {dimension_numbers = #tpu.dot_dimension_numbers<[1], [0], [0], [1], [0, 0, 1, 1], [], []>} : vector<8x128xbf16>, vector<128x128xbf16>, vector<8x128xf32> -> vector<8x128xf32>
    %c0_3 = arith.constant 0 : index
    %c0_4 = arith.constant 0 : index
    %4 = vector.load %arg4[%c0_3, %c0_4] : memref<1x128xf32, #tpu.memory_space<vmem>>, vector<1x128xf32>
    %5 = vector.broadcast %4 : vector<1x128xf32> to vector<8x128xf32>
    %6 = arith.addf %3, %5 : vector<8x128xf32>
    %cst_5 = arith.constant 0.000000e+00 : f32
    %7 = vector.broadcast %cst_5 : f32 to vector<8x128xf32>
    %8 = arith.maximumf %6, %7 : vector<8x128xf32>
    %9 = arith.truncf %8 : vector<8x128xf32> to vector<8x128xbf16>
    %c0_6 = arith.constant 0 : index
    %c0_7 = arith.constant 0 : index
    %10 = vector.load %arg5[%c0_6, %c0_7] : memref<128x128xbf16, #tpu.memory_space<vmem>>, vector<128x128xbf16>
    %cst_8 = arith.constant dense<0.000000e+00> : vector<8x128xf32>
    %11 = tpu.matmul %9, %10, %cst_8 {dimension_numbers = #tpu.dot_dimension_numbers<[1], [0], [0], [1], [0, 0, 1, 1], [], []>} : vector<8x128xbf16>, vector<128x128xbf16>, vector<8x128xf32> -> vector<8x128xf32>
    %c0_9 = arith.constant 0 : index
    %c0_10 = arith.constant 0 : index
    %12 = vector.load %arg6[%c0_9, %c0_10] : memref<1x128xf32, #tpu.memory_space<vmem>>, vector<1x128xf32>
    %13 = vector.broadcast %12 : vector<1x128xf32> to vector<8x128xf32>
    %14 = arith.addf %11, %13 : vector<8x128xf32>
    %15 = arith.truncf %14 : vector<8x128xf32> to vector<8x128xbf16>
    %16 = tpu.iota {dimensions = array<i32: 1>} : vector<2x8xi32>
    %cst_11 = arith.constant 0.000000e+00 : f32
    %17 = vector.broadcast %cst_11 : f32 to vector<2x128xf32>
    %c0_12 = arith.constant 0 : index
    %c0_13 = arith.constant 0 : index
    %c0_14 = arith.constant 0 : index
    %18 = vector.load %arg1[%c0_12, %c0_13, %c0_14] : memref<4x2x1xi32, #tpu.memory_space<vmem>>, vector<1x2x1xi32>
    %19 = vector.shape_cast %18 : vector<1x2x1xi32> to vector<2x1xi32>
    %20 = vector.broadcast %19 : vector<2x1xi32> to vector<2x8xi32>
    %21 = arith.cmpi eq, %16, %20 : vector<2x8xi32>
    %cst_15 = arith.constant 1.000000e+00 : f32
    %cst_16 = arith.constant 0.000000e+00 : f32
    %22 = vector.broadcast %cst_15 : f32 to vector<2x8xf32>
    %23 = vector.broadcast %cst_16 : f32 to vector<2x8xf32>
    %24 = arith.select %21, %22, %23 : vector<2x8xi1>, vector<2x8xf32>
    %25 = arith.truncf %24 : vector<2x8xf32> to vector<2x8xbf16>
    %cst_17 = arith.constant dense<0.000000e+00> : vector<2x128xf32>
    %26 = tpu.matmul %25, %15, %cst_17 {dimension_numbers = #tpu.dot_dimension_numbers<[1], [0], [0], [1], [0, 0, 1, 1], [], []>} : vector<2x8xbf16>, vector<8x128xbf16>, vector<2x128xf32> -> vector<2x128xf32>
    %27 = arith.truncf %26 : vector<2x128xf32> to vector<2x128xbf16>
    %c0_18 = arith.constant 0 : index
    %c0_19 = arith.constant 0 : index
    %c0_20 = arith.constant 0 : index
    %28 = vector.load %arg7[%c0_18, %c0_19, %c0_20] : memref<4x128x128xbf16, #tpu.memory_space<vmem>>, vector<1x128x128xbf16>
    %29 = vector.shape_cast %28 : vector<1x128x128xbf16> to vector<128x128xbf16>
    %cst_21 = arith.constant dense<0.000000e+00> : vector<2x128xf32>
    %30 = tpu.matmul %27, %29, %cst_21 {dimension_numbers = #tpu.dot_dimension_numbers<[1], [0], [0], [1], [0, 0, 1, 1], [], []>} : vector<2x128xbf16>, vector<128x128xbf16>, vector<2x128xf32> -> vector<2x128xf32>
    %31 = arith.addf %17, %30 : vector<2x128xf32>
    %c1 = arith.constant 1 : index
    %c0_22 = arith.constant 0 : index
    %c0_23 = arith.constant 0 : index
    %32 = vector.load %arg1[%c1, %c0_22, %c0_23] : memref<4x2x1xi32, #tpu.memory_space<vmem>>, vector<1x2x1xi32>
    %33 = vector.shape_cast %32 : vector<1x2x1xi32> to vector<2x1xi32>
    %34 = vector.broadcast %33 : vector<2x1xi32> to vector<2x8xi32>
    %35 = arith.cmpi eq, %16, %34 : vector<2x8xi32>
    %cst_24 = arith.constant 1.000000e+00 : f32
    %cst_25 = arith.constant 0.000000e+00 : f32
    %36 = vector.broadcast %cst_24 : f32 to vector<2x8xf32>
    %37 = vector.broadcast %cst_25 : f32 to vector<2x8xf32>
    %38 = arith.select %35, %36, %37 : vector<2x8xi1>, vector<2x8xf32>
    %39 = arith.truncf %38 : vector<2x8xf32> to vector<2x8xbf16>
    %cst_26 = arith.constant dense<0.000000e+00> : vector<2x128xf32>
    %40 = tpu.matmul %39, %15, %cst_26 {dimension_numbers = #tpu.dot_dimension_numbers<[1], [0], [0], [1], [0, 0, 1, 1], [], []>} : vector<2x8xbf16>, vector<8x128xbf16>, vector<2x128xf32> -> vector<2x128xf32>
    %41 = arith.truncf %40 : vector<2x128xf32> to vector<2x128xbf16>
    %c1_27 = arith.constant 1 : index
    %c0_28 = arith.constant 0 : index
    %c0_29 = arith.constant 0 : index
    %42 = vector.load %arg7[%c1_27, %c0_28, %c0_29] : memref<4x128x128xbf16, #tpu.memory_space<vmem>>, vector<1x128x128xbf16>
    %43 = vector.shape_cast %42 : vector<1x128x128xbf16> to vector<128x128xbf16>
    %cst_30 = arith.constant dense<0.000000e+00> : vector<2x128xf32>
    %44 = tpu.matmul %41, %43, %cst_30 {dimension_numbers = #tpu.dot_dimension_numbers<[1], [0], [0], [1], [0, 0, 1, 1], [], []>} : vector<2x128xbf16>, vector<128x128xbf16>, vector<2x128xf32> -> vector<2x128xf32>
    %45 = arith.addf %31, %44 : vector<2x128xf32>
    %c2 = arith.constant 2 : index
    %c0_31 = arith.constant 0 : index
    %c0_32 = arith.constant 0 : index
    %46 = vector.load %arg1[%c2, %c0_31, %c0_32] : memref<4x2x1xi32, #tpu.memory_space<vmem>>, vector<1x2x1xi32>
    %47 = vector.shape_cast %46 : vector<1x2x1xi32> to vector<2x1xi32>
    %48 = vector.broadcast %47 : vector<2x1xi32> to vector<2x8xi32>
    %49 = arith.cmpi eq, %16, %48 : vector<2x8xi32>
    %cst_33 = arith.constant 1.000000e+00 : f32
    %cst_34 = arith.constant 0.000000e+00 : f32
    %50 = vector.broadcast %cst_33 : f32 to vector<2x8xf32>
    %51 = vector.broadcast %cst_34 : f32 to vector<2x8xf32>
    %52 = arith.select %49, %50, %51 : vector<2x8xi1>, vector<2x8xf32>
    %53 = arith.truncf %52 : vector<2x8xf32> to vector<2x8xbf16>
    %cst_35 = arith.constant dense<0.000000e+00> : vector<2x128xf32>
    %54 = tpu.matmul %53, %15, %cst_35 {dimension_numbers = #tpu.dot_dimension_numbers<[1], [0], [0], [1], [0, 0, 1, 1], [], []>} : vector<2x8xbf16>, vector<8x128xbf16>, vector<2x128xf32> -> vector<2x128xf32>
    %55 = arith.truncf %54 : vector<2x128xf32> to vector<2x128xbf16>
    %c2_36 = arith.constant 2 : index
    %c0_37 = arith.constant 0 : index
    %c0_38 = arith.constant 0 : index
    %56 = vector.load %arg7[%c2_36, %c0_37, %c0_38] : memref<4x128x128xbf16, #tpu.memory_space<vmem>>, vector<1x128x128xbf16>
    %57 = vector.shape_cast %56 : vector<1x128x128xbf16> to vector<128x128xbf16>
    %cst_39 = arith.constant dense<0.000000e+00> : vector<2x128xf32>
    %58 = tpu.matmul %55, %57, %cst_39 {dimension_numbers = #tpu.dot_dimension_numbers<[1], [0], [0], [1], [0, 0, 1, 1], [], []>} : vector<2x128xbf16>, vector<128x128xbf16>, vector<2x128xf32> -> vector<2x128xf32>
    %59 = arith.addf %45, %58 : vector<2x128xf32>
    %c3 = arith.constant 3 : index
    %c0_40 = arith.constant 0 : index
    %c0_41 = arith.constant 0 : index
    %60 = vector.load %arg1[%c3, %c0_40, %c0_41] : memref<4x2x1xi32, #tpu.memory_space<vmem>>, vector<1x2x1xi32>
    %61 = vector.shape_cast %60 : vector<1x2x1xi32> to vector<2x1xi32>
    %62 = vector.broadcast %61 : vector<2x1xi32> to vector<2x8xi32>
    %63 = arith.cmpi eq, %16, %62 : vector<2x8xi32>
    %cst_42 = arith.constant 1.000000e+00 : f32
    %cst_43 = arith.constant 0.000000e+00 : f32
    %64 = vector.broadcast %cst_42 : f32 to vector<2x8xf32>
    %65 = vector.broadcast %cst_43 : f32 to vector<2x8xf32>
    %66 = arith.select %63, %64, %65 : vector<2x8xi1>, vector<2x8xf32>
    %67 = arith.truncf %66 : vector<2x8xf32> to vector<2x8xbf16>
    %cst_44 = arith.constant dense<0.000000e+00> : vector<2x128xf32>
    %68 = tpu.matmul %67, %15, %cst_44 {dimension_numbers = #tpu.dot_dimension_numbers<[1], [0], [0], [1], [0, 0, 1, 1], [], []>} : vector<2x8xbf16>, vector<8x128xbf16>, vector<2x128xf32> -> vector<2x128xf32>
    %69 = arith.truncf %68 : vector<2x128xf32> to vector<2x128xbf16>
    %c3_45 = arith.constant 3 : index
    %c0_46 = arith.constant 0 : index
    %c0_47 = arith.constant 0 : index
    %70 = vector.load %arg7[%c3_45, %c0_46, %c0_47] : memref<4x128x128xbf16, #tpu.memory_space<vmem>>, vector<1x128x128xbf16>
    %71 = vector.shape_cast %70 : vector<1x128x128xbf16> to vector<128x128xbf16>
    %cst_48 = arith.constant dense<0.000000e+00> : vector<2x128xf32>
    %72 = tpu.matmul %69, %71, %cst_48 {dimension_numbers = #tpu.dot_dimension_numbers<[1], [0], [0], [1], [0, 0, 1, 1], [], []>} : vector<2x128xbf16>, vector<128x128xbf16>, vector<2x128xf32> -> vector<2x128xf32>
    %73 = arith.addf %59, %72 : vector<2x128xf32>
    %c0_49 = arith.constant 0 : index
    %c0_50 = arith.constant 0 : index
    %74 = vector.load %arg8[%c0_49, %c0_50] : memref<1x128xf32, #tpu.memory_space<vmem>>, vector<1x128xf32>
    %75 = vector.broadcast %74 : vector<1x128xf32> to vector<2x128xf32>
    %76 = arith.addf %73, %75 : vector<2x128xf32>
    %77 = arith.mulf %76, %76 : vector<2x128xf32>
    %cst_51 = arith.constant dense<0.000000e+00> : vector<2xf32>
    %78 = vector.multi_reduction <add>, %77, %cst_51 [1] : vector<2x128xf32> to vector<2xf32>
    %79 = vector.shape_cast %78 : vector<2xf32> to vector<2x1xf32>
    %cst_52 = arith.constant 1.000000e-24 : f32
    %80 = vector.broadcast %cst_52 : f32 to vector<2x1xf32>
    %81 = arith.maximumf %79, %80 : vector<2x1xf32>
    %82 = math.rsqrt %81 : vector<2x1xf32>
    %83 = vector.broadcast %82 : vector<2x1xf32> to vector<2x128xf32>
    %84 = arith.mulf %76, %83 : vector<2x128xf32>
    %c0_53 = arith.constant 0 : index
    %c0_54 = arith.constant 0 : index
    %85 = vector.load %arg9[%c0_53, %c0_54] : memref<2x128xf32, #tpu.memory_space<vmem>>, vector<2x128xf32>
    tpu.vector_store %arg9[%c0_53, %c0_54], %84 {strides = array<i32>} : memref<2x128xf32, #tpu.memory_space<vmem>>, vector<2x128xf32>,
    return
  }
  func.func @transform_0(%arg0: i32) -> (i32, i32, i32) {
    %c0_i32 = arith.constant 0 : i32
    %c0_i32_0 = arith.constant 0 : i32
    %c0_i32_1 = arith.constant 0 : i32
    %c0_i32_2 = arith.constant 0 : i32
    return %c0_i32, %c0_i32_0, %c0_i32_1 : i32, i32, i32
  }
  func.func @transform_1(%arg0: i32) -> (i32, i32) {
    %c0_i32 = arith.constant 0 : i32
    %c0_i32_0 = arith.constant 0 : i32
    %c0_i32_1 = arith.constant 0 : i32
    return %c0_i32, %c0_i32_0 : i32, i32
  }
  func.func @transform_2(%arg0: i32) -> (i32, i32) {
    %c0_i32 = arith.constant 0 : i32
    %c0_i32_0 = arith.constant 0 : i32
    %c0_i32_1 = arith.constant 0 : i32
    return %c0_i32, %c0_i32_0 : i32, i32
  }
  func.func @transform_3(%arg0: i32) -> (i32, i32) {
    %c0_i32 = arith.constant 0 : i32
    %c0_i32_0 = arith.constant 0 : i32
    %c0_i32_1 = arith.constant 0 : i32
    return %c0_i32, %c0_i32_0 : i32, i32
  }
  func.func @transform_4(%arg0: i32) -> (i32, i32) {
    %c0_i32 = arith.constant 0 : i32
    %c0_i32_0 = arith.constant 0 : i32
    %c0_i32_1 = arith.constant 0 : i32
    return %c0_i32, %c0_i32_0 : i32, i32
  }
  func.func @transform_5(%arg0: i32) -> (i32, i32) {
    %c0_i32 = arith.constant 0 : i32
    %c0_i32_0 = arith.constant 0 : i32
    %c0_i32_1 = arith.constant 0 : i32
    return %c0_i32, %c0_i32_0 : i32, i32
  }
  func.func @transform_6(%arg0: i32) -> (i32, i32, i32) {
    %c0_i32 = arith.constant 0 : i32
    %c0_i32_0 = arith.constant 0 : i32
    %c0_i32_1 = arith.constant 0 : i32
    %c0_i32_2 = arith.constant 0 : i32
    return %c0_i32, %c0_i32_0, %c0_i32_1 : i32, i32, i32
  }
  func.func @transform_7(%arg0: i32) -> (i32, i32) {
    %c0_i32 = arith.constant 0 : i32
    %c0_i32_0 = arith.constant 0 : i32
    %c0_i32_1 = arith.constant 0 : i32
    return %c0_i32, %c0_i32_0 : i32, i32
  }
  func.func @transform_8(%arg0: i32) -> (i32, i32) {
    %c0_i32 = arith.constant 0 : i32
    %c0_i32_0 = arith.constant 0 : i32
    %c0_i32_1 = arith.constant 0 : i32
    return %c0_i32, %c0_i32_0 : i32, i32
  }
}

</mosaic_0001>

<llo_original>
// kernel: _lambda_.2
$region0: #{_lambda_.2}
  #allocation0 [shape = 'u32[]', space=smem, size = 0x4, offset = 0x4, fixed_abs, tag = 'smem constant byte address 0x4 - core index']
  #allocation1 [shape = 'u32[72,128]{1,0:T(1,128)}', space=vmem, size = 0x9000, scoped, tag = 'internal scratch']
  %s0 = inlined_call_operand.vmem [shape: f32[10,256,128], index: 0, kind: input, shape index: {}]
  %s1 = inlined_call_operand.vmem [shape: bf16[128,128], index: 1, kind: input, shape index: {}]
  %s2 = inlined_call_operand.vmem [shape: f32[1,128], index: 2, kind: input, shape index: {}]
  %s3 = inlined_call_operand.vmem [shape: bf16[128,128], index: 3, kind: input, shape index: {}]
  %s4 = inlined_call_operand.vmem [shape: f32[1,128], index: 4, kind: input, shape index: {}]
  %s5 = inlined_call_operand.vmem [shape: bf16[128,128], index: 5, kind: input, shape index: {}]
  %s6 = inlined_call_operand.vmem [shape: f32[1,128], index: 6, kind: input, shape index: {}]
  %s7 = inlined_call_operand.vmem [shape: bf16[128,128], index: 7, kind: input, shape index: {}]
  %s8 = inlined_call_operand.vmem [shape: f32[1,128], index: 8, kind: input, shape index: {}]
  %s9 = inlined_call_operand.vmem [shape: f32[2,5,128], index: 9, kind: output, shape index: {0}]
  %s10 = inlined_call_operand.vmem [shape: f32[2,5,128], index: 10, kind: output, shape index: {1}]
  %s11 = inlined_call_operand.vmem [shape: f32[2,5,128], index: 11, kind: output, shape index: {2}]
  %12 = xla_tuple %s9, %s10, %s11
  %s13 = sld [smem:[#allocation0]]
  $region85: #{_lambda_.2} parent=0
    _
  %s15 = ssub.s32 1, %s13
  %s16 = scalar_select 0, %s15, %s13
  loop: start=0, step=1, limit=4
  $region2: #{_lambda_.2} parent=0 // loop_pre_header
    _
  $region3: #{_lambda_.2} parent=0 // loop_header
    %s18 = sphi 0, %s22
    %p19 = scmp.ge.s32.totalorder %s18, 4
    %s28 = sphi 0, %s30
    %s31 = sphi 0, %s28
    %s32 = sphi 0, %s31
    %s48 = sphi 0, %s32
    %s52 = sphi 0, %s52
    %s54 = sphi 0, %s52
    %s55 = sphi 0, %s54
    %s69 = sphi 0, %s55
    %s73 = sphi 0, %s73
    %s75 = sphi 0, %s73
    %s76 = sphi 0, %s75
    %s90 = sphi 0, %s76
    %s94 = sphi 0, %s94
    %s96 = sphi 0, %s94
    %s97 = sphi 0, %s96
    %s111 = sphi 0, %s97
    %s115 = sphi 0, %s115
    %s117 = sphi 0, %s115
    %s118 = sphi 0, %s117
    %s132 = sphi 0, %s118
    %s136 = sphi 0, %s136
    %s138 = sphi 0, %s136
    %s139 = sphi 0, %s138
    %s153 = sphi 0, %s139
    %s157 = sphi 0, %s157
    %s159 = sphi 0, %s157
    %s160 = sphi 0, %s159
    %s174 = sphi 0, %s160
    %s178 = sphi 0, %s178
    %s180 = sphi 0, %s178
    %s181 = sphi 0, %s180
    %s195 = sphi 0, %s181
    %s199 = sphi 0, %s199
    %s201 = sphi 0, %s199
    %s202 = sphi 0, %s201
    %s216 = sphi 0, %s202
    %s222 = sphi 0, %s224
    %s225 = sphi 0, %s222
    %s226 = sphi 0, %s225
    %s242 = sphi 0, %s226
    %s248 = sphi 0, %s250
    %s251 = sphi 0, %s248
    %s252 = sphi 0, %s251
    %s268 = sphi 0, %s252
    %s274 = sphi 0, %s276
    %s277 = sphi 0, %s274
    %s278 = sphi 0, %s277
    %s294 = sphi 0, %s278
  $region4: #{_lambda_.2} parent=0 // loop_header_branch
    %21 = sbr.rel (%p19) target = $region8
  $region5: #{_lambda_.2} parent=0 // loop_body
    %s23 = ssub.s32 %s18, 1
    %s24 = ssub.s32 %s18, 2
    %s25 = sadd.s32 %s18, 1
    %s26 = ssub.s32 %s18, %s25
    %p27 = scmp.eq.s32.totalorder %s26, 0
    %s29 = sadd.s32 %s28, 1
    %s30 = scalar_select %p27, %s28, %s29
    %p33 = pneg %p27
    %p34 = scmp.eq.s32.totalorder %s18, 1
    %p35 = por %p33, %p34
    %p36 = scmp.ne.s32.totalorder %s28, %s31
    %p37 = scmp.eq.s32.totalorder %s18, 0
    %p38 = por %p36, %p37
    %p39 = scmp.ne.s32.totalorder %s28, %s31
    %p40 = scmp.eq.s32.totalorder %s23, 1
    %p41 = por %p39, %p40
    %p42 = scmp.ne.s32.totalorder %s31, %s32
    %p43 = scmp.eq.s32.totalorder %s23, 0
    %p44 = por %p42, %p43
    %p45 = scmp.ne.s32.totalorder %s31, %s32
    %p46 = scmp.eq.s32.totalorder %s24, 1
    %p47 = por %p45, %p46
    %p49 = scmp.ne.s32.totalorder %s32, %s48
    %p50 = scmp.eq.s32.totalorder %s24, 0
    %p51 = por %p49, %p50
    %s53 = sadd.s32 %s52, 1
    %p56 = scmp.eq.s32.totalorder %s18, 1
    %p57 = scmp.ne.s32.totalorder %s52, %s54
    %p58 = scmp.eq.s32.totalorder %s18, 0
    %p59 = por %p57, %p58
    %p60 = scmp.ne.s32.totalorder %s52, %s54
    %p61 = scmp.eq.s32.totalorder %s23, 1
    %p62 = por %p60, %p61
    %p63 = scmp.ne.s32.totalorder %s54, %s55
    %p64 = scmp.eq.s32.totalorder %s23, 0
    %p65 = por %p63, %p64
    %p66 = scmp.ne.s32.totalorder %s54, %s55
    %p67 = scmp.eq.s32.totalorder %s24, 1
    %p68 = por %p66, %p67
    %p70 = scmp.ne.s32.totalorder %s55, %s69
    %p71 = scmp.eq.s32.totalorder %s24, 0
    %p72 = por %p70, %p71
    %s74 = sadd.s32 %s73, 1
    %p77 = scmp.eq.s32.totalorder %s18, 1
    %p78 = scmp.ne.s32.totalorder %s73, %s75
    %p79 = scmp.eq.s32.totalorder %s18, 0
    %p80 = por %p78, %p79
    %p81 = scmp.ne.s32.totalorder %s73, %s75
    %p82 = scmp.eq.s32.totalorder %s23, 1
    %p83 = por %p81, %p82
    %p84 = scmp.ne.s32.totalorder %s75, %s76
    %p85 = scmp.eq.s32.totalorder %s23, 0
    %p86 = por %p84, %p85
    %p87 = scmp.ne.s32.totalorder %s75, %s76
    %p88 = scmp.eq.s32.totalorder %s24, 1
    %p89 = por %p87, %p88
    %p91 = scmp.ne.s32.totalorder %s76, %s90
    %p92 = scmp.eq.s32.totalorder %s24, 0
    %p93 = por %p91, %p92
    %s95 = sadd.s32 %s94, 1
    %p98 = scmp.eq.s32.totalorder %s18, 1
    %p99 = scmp.ne.s32.totalorder %s94, %s96
    %p100 = scmp.eq.s32.totalorder %s18, 0
    %p101 = por %p99, %p100
    %p102 = scmp.ne.s32.totalorder %s94, %s96
    %p103 = scmp.eq.s32.totalorder %s23, 1
    %p104 = por %p102, %p103
    %p105 = scmp.ne.s32.totalorder %s96, %s97
    %p106 = scmp.eq.s32.totalorder %s23, 0
    %p107 = por %p105, %p106
    %p108 = scmp.ne.s32.totalorder %s96, %s97
    %p109 = scmp.eq.s32.totalorder %s24, 1
    %p110 = por %p108, %p109
    %p112 = scmp.ne.s32.totalorder %s97, %s111
    %p113 = scmp.eq.s32.totalorder %s24, 0
    %p114 = por %p112, %p113
    %s116 = sadd.s32 %s115, 1
    %p119 = scmp.eq.s32.totalorder %s18, 1
    %p120 = scmp.ne.s32.totalorder %s115, %s117
    %p121 = scmp.eq.s32.totalorder %s18, 0
    %p122 = por %p120, %p121
    %p123 = scmp.ne.s32.totalorder %s115, %s117
    %p124 = scmp.eq.s32.totalorder %s23, 1
    %p125 = por %p123, %p124
    %p126 = scmp.ne.s32.totalorder %s117, %s118
    %p127 = scmp.eq.s32.totalorder %s23, 0
    %p128 = por %p126, %p127
    %p129 = scmp.ne.s32.totalorder %s117, %s118
    %p130 = scmp.eq.s32.totalorder %s24, 1
    %p131 = por %p129, %p130
    %p133 = scmp.ne.s32.totalorder %s118, %s132
    %p134 = scmp.eq.s32.totalorder %s24, 0
    %p135 = por %p133, %p134
    %s137 = sadd.s32 %s136, 1
    %p140 = scmp.eq.s32.totalorder %s18, 1
    %p141 = scmp.ne.s32.totalorder %s136, %s138
    %p142 = scmp.eq.s32.totalorder %s18, 0
    %p143 = por %p141, %p142
    %p144 = scmp.ne.s32.totalorder %s136, %s138
    %p145 = scmp.eq.s32.totalorder %s23, 1
    %p146 = por %p144, %p145
    %p147 = scmp.ne.s32.totalorder %s138, %s139
    %p148 = scmp.eq.s32.totalorder %s23, 0
    %p149 = por %p147, %p148
    %p150 = scmp.ne.s32.totalorder %s138, %s139
    %p151 = scmp.eq.s32.totalorder %s24, 1
    %p152 = por %p150, %p151
    %p154 = scmp.ne.s32.totalorder %s139, %s153
    %p155 = scmp.eq.s32.totalorder %s24, 0
    %p156 = por %p154, %p155
    %s158 = sadd.s32 %s157, 1
    %p161 = scmp.eq.s32.totalorder %s18, 1
    %p162 = scmp.ne.s32.totalorder %s157, %s159
    %p163 = scmp.eq.s32.totalorder %s18, 0
    %p164 = por %p162, %p163
    %p165 = scmp.ne.s32.totalorder %s157, %s159
    %p166 = scmp.eq.s32.totalorder %s23, 1
    %p167 = por %p165, %p166
    %p168 = scmp.ne.s32.totalorder %s159, %s160
    %p169 = scmp.eq.s32.totalorder %s23, 0
    %p170 = por %p168, %p169
    %p171 = scmp.ne.s32.totalorder %s159, %s160
    %p172 = scmp.eq.s32.totalorder %s24, 1
    %p173 = por %p171, %p172
    %p175 = scmp.ne.s32.totalorder %s160, %s174
    %p176 = scmp.eq.s32.totalorder %s24, 0
    %p177 = por %p175, %p176
    %s179 = sadd.s32 %s178, 1
    %p182 = scmp.eq.s32.totalorder %s18, 1
    %p183 = scmp.ne.s32.totalorder %s178, %s180
    %p184 = scmp.eq.s32.totalorder %s18, 0
    %p185 = por %p183, %p184
    %p186 = scmp.ne.s32.totalorder %s178, %s180
    %p187 = scmp.eq.s32.totalorder %s23, 1
    %p188 = por %p186, %p187
    %p189 = scmp.ne.s32.totalorder %s180, %s181
    %p190 = scmp.eq.s32.totalorder %s23, 0
    %p191 = por %p189, %p190
    %p192 = scmp.ne.s32.totalorder %s180, %s181
    %p193 = scmp.eq.s32.totalorder %s24, 1
    %p194 = por %p192, %p193
    %p196 = scmp.ne.s32.totalorder %s181, %s195
    %p197 = scmp.eq.s32.totalorder %s24, 0
    %p198 = por %p196, %p197
    %s200 = sadd.s32 %s199, 1
    %p203 = scmp.eq.s32.totalorder %s18, 1
    %p204 = scmp.ne.s32.totalorder %s199, %s201
    %p205 = scmp.eq.s32.totalorder %s18, 0
    %p206 = por %p204, %p205
    %p207 = scmp.ne.s32.totalorder %s199, %s201
    %p208 = scmp.eq.s32.totalorder %s23, 1
    %p209 = por %p207, %p208
    %p210 = scmp.ne.s32.totalorder %s201, %s202
    %p211 = scmp.eq.s32.totalorder %s23, 0
    %p212 = por %p210, %p211
    %p213 = scmp.ne.s32.totalorder %s201, %s202
    %p214 = scmp.eq.s32.totalorder %s24, 1
    %p215 = por %p213, %p214
    %p217 = scmp.ne.s32.totalorder %s202, %s216
    %p218 = scmp.eq.s32.totalorder %s24, 0
    %p219 = por %p217, %p218
    %s220 = ssub.s32 %s18, %s25
    %p221 = scmp.eq.s32.totalorder %s220, 0
    %s223 = sadd.s32 %s222, 1
    %s224 = scalar_select %p221, %s222, %s223
    %p227 = pneg %p221
    %p228 = scmp.eq.s32.totalorder %s18, 1
    %p229 = por %p227, %p228
    %p230 = scmp.ne.s32.totalorder %s222, %s225
    %p231 = scmp.eq.s32.totalorder %s18, 0
    %p232 = por %p230, %p231
    %p233 = scmp.ne.s32.totalorder %s222, %s225
    %p234 = scmp.eq.s32.totalorder %s23, 1
    %p235 = por %p233, %p234
    %p236 = scmp.ne.s32.totalorder %s225, %s226
    %p237 = scmp.eq.s32.totalorder %s23, 0
    %p238 = por %p236, %p237
    %p239 = scmp.ne.s32.totalorder %s225, %s226
    %p240 = scmp.eq.s32.totalorder %s24, 1
    %p241 = por %p239, %p240
    %p243 = scmp.ne.s32.totalorder %s226, %s242
    %p244 = scmp.eq.s32.totalorder %s24, 0
    %p245 = por %p243, %p244
    %s246 = ssub.s32 %s18, %s25
    %p247 = scmp.eq.s32.totalorder %s246, 0
    %s249 = sadd.s32 %s248, 1
    %s250 = scalar_select %p247, %s248, %s249
    %p253 = pneg %p247
    %p254 = scmp.eq.s32.totalorder %s18, 1
    %p255 = por %p253, %p254
    %p256 = scmp.ne.s32.totalorder %s248, %s251
    %p257 = scmp.eq.s32.totalorder %s18, 0
    %p258 = por %p256, %p257
    %p259 = scmp.ne.s32.totalorder %s248, %s251
    %p260 = scmp.eq.s32.totalorder %s23, 1
    %p261 = por %p259, %p260
    %p262 = scmp.ne.s32.totalorder %s251, %s252
    %p263 = scmp.eq.s32.totalorder %s23, 0
    %p264 = por %p262, %p263
    %p265 = scmp.ne.s32.totalorder %s251, %s252
    %p266 = scmp.eq.s32.totalorder %s24, 1
    %p267 = por %p265, %p266
    %p269 = scmp.ne.s32.totalorder %s252, %s268
    %p270 = scmp.eq.s32.totalorder %s24, 0
    %p271 = por %p269, %p270
    %s272 = ssub.s32 %s18, %s25
    %p273 = scmp.eq.s32.totalorder %s272, 0
    %s275 = sadd.s32 %s274, 1
    %s276 = scalar_select %p273, %s274, %s275
    %p279 = pneg %p273
    %p280 = scmp.eq.s32.totalorder %s18, 1
    %p281 = por %p279, %p280
    %p282 = scmp.ne.s32.totalorder %s274, %s277
    %p283 = scmp.eq.s32.totalorder %s18, 0
    %p284 = por %p282, %p283
    %p285 = scmp.ne.s32.totalorder %s274, %s277
    %p286 = scmp.eq.s32.totalorder %s23, 1
    %p287 = por %p285, %p286
    %p288 = scmp.ne.s32.totalorder %s277, %s278
    %p289 = scmp.eq.s32.totalorder %s23, 0
    %p290 = por %p288, %p289
    %p291 = scmp.ne.s32.totalorder %s277, %s278
    %p292 = scmp.eq.s32.totalorder %s24, 1
    %p293 = por %p291, %p292
    %p295 = scmp.ne.s32.totalorder %s278, %s294
    %p296 = scmp.eq.s32.totalorder %s24, 0
    %p297 = por %p295, %p296
    %p298 = scmp.le.s32.totalorder 1, %s18
    %p299 = scmp.lt.s32.totalorder %s18, 3
    %p300 = pnand %p298, %p299
    %p301 = pneg %p300
    // Predicated region
    $region9: #{_lambda_.2} parent=5 // pred_check
      _
    $region10: #{_lambda_.2} parent=5 // pred_check_branch
      %303 = sbr.rel (%p300) target = $region12
    $region11: #{_lambda_.2} parent=5 // pred_region
      %s304 = ssub.s32 %s18, 1
      // Predicated region
      $region13: #{_lambda_.2} parent=11 // pred_check
        %p305 = pneg %p65
      $region14: #{_lambda_.2} parent=11 // pred_check_branch
        %307 = sbr.rel (%p305) target = $region16
      $region15: #{_lambda_.2} parent=11 // pred_region
        _
      $region16: #{_lambda_.2} parent=11 // pred_fallthru
        _
      // Predicated region
      $region17: #{_lambda_.2} parent=11 // pred_check
        %p308 = pneg %p86
      $region18: #{_lambda_.2} parent=11 // pred_check_branch
        %310 = sbr.rel (%p308) target = $region20
      $region19: #{_lambda_.2} parent=11 // pred_region
        _
      $region20: #{_lambda_.2} parent=11 // pred_fallthru
        _
      // Predicated region
      $region21: #{_lambda_.2} parent=11 // pred_check
        %p311 = pneg %p107
      $region22: #{_lambda_.2} parent=11 // pred_check_branch
        %313 = sbr.rel (%p311) target = $region24
      $region23: #{_lambda_.2} parent=11 // pred_region
        _
      $region24: #{_lambda_.2} parent=11 // pred_fallthru
        _
      // Predicated region
      $region25: #{_lambda_.2} parent=11 // pred_check
        %p314 = pneg %p128
      $region26: #{_lambda_.2} parent=11 // pred_check_branch
        %316 = sbr.rel (%p314) target = $region28
      $region27: #{_lambda_.2} parent=11 // pred_region
        _
      $region28: #{_lambda_.2} parent=11 // pred_fallthru
        _
      // Predicated region
      $region29: #{_lambda_.2} parent=11 // pred_check
        %p317 = pneg %p149
      $region30: #{_lambda_.2} parent=11 // pred_check_branch
        %319 = sbr.rel (%p317) target = $region32
      $region31: #{_lambda_.2} parent=11 // pred_region
        _
      $region32: #{_lambda_.2} parent=11 // pred_fallthru
        _
      // Predicated region
      $region33: #{_lambda_.2} parent=11 // pred_check
        %p320 = pneg %p170
      $region34: #{_lambda_.2} parent=11 // pred_check_branch
        %322 = sbr.rel (%p320) target = $region36
      $region35: #{_lambda_.2} parent=11 // pred_region
        _
      $region36: #{_lambda_.2} parent=11 // pred_fallthru
        _
      // Predicated region
      $region37: #{_lambda_.2} parent=11 // pred_check
        %p323 = pneg %p191
      $region38: #{_lambda_.2} parent=11 // pred_check_branch
        %325 = sbr.rel (%p323) target = $region40
      $region39: #{_lambda_.2} parent=11 // pred_region
        _
      $region40: #{_lambda_.2} parent=11 // pred_fallthru
        _
      // Predicated region
      $region41: #{_lambda_.2} parent=11 // pred_check
        %p326 = pneg %p212
      $region42: #{_lambda_.2} parent=11 // pred_check_branch
        %328 = sbr.rel (%p326) target = $region44
      $region43: #{_lambda_.2} parent=11 // pred_region
        _
      $region44: #{_lambda_.2} parent=11 // pred_fallthru
        _
    $region12: #{_lambda_.2} parent=5 // pred_fallthru
      _
    %p329 = scmp.lt.s32.totalorder %s18, 2
    // Predicated region
    $region45: #{_lambda_.2} parent=5 // pred_check
      %p330 = pneg %p329
    $region46: #{_lambda_.2} parent=5 // pred_check_branch
      %332 = sbr.rel (%p330) target = $region48
    $region47: #{_lambda_.2} parent=5 // pred_region
      // Predicated region
      $region49: #{_lambda_.2} parent=47 // pred_check
        %p333 = pneg %p38
      $region50: #{_lambda_.2} parent=47 // pred_check_branch
        %335 = sbr.rel (%p333) target = $region52
      $region51: #{_lambda_.2} parent=47 // pred_region
        %s336 = smul.u32 5, %s18
        %p337 = scmp.lt.s32.totalorder %s336, 9
        %s338 = scalar_select %p337, %s336, 9
        %s339 = smul.addr %s338, 32
        %s340 = smul.addr %s339, 8
        %s341 = scalar_lea.vmem %s0, %s340
        %s342 = smul.u32 5, %s18
      $region52: #{_lambda_.2} parent=47 // pred_fallthru
        _
    $region48: #{_lambda_.2} parent=5 // pred_fallthru
      _
    %p343 = scmp.le.s32.totalorder 1, %s18
    %p344 = scmp.lt.s32.totalorder %s18, 3
    %p345 = pnand %p343, %p344
    %p346 = pneg %p345
    // Predicated region
    $region53: #{_lambda_.2} parent=5 // pred_check
      _
    $region54: #{_lambda_.2} parent=5 // pred_check_branch
      %348 = sbr.rel (%p345) target = $region56
    $region55: #{_lambda_.2} parent=5 // pred_region
      %s349 = ssub.s32 %s18, 1
      %s350 = smul.u32 5, %s23
      %p351 = scmp.lt.s32.totalorder %s350, 9
      %s352 = scalar_select %p351, %s350, 9
      %s353 = smul.addr %s352, 32
      %s354 = smul.addr %s353, 8
      %s355 = scalar_lea.vmem %s0, %s354
      %p356 = pneg %p44
      %p357 = pneg %p41
      %p358 = pneg %p65
      %p359 = pneg %p62
      %p360 = pneg %p86
      %p361 = pneg %p83
      %p362 = pneg %p107
      %p363 = pneg %p104
      %p364 = pneg %p128
      %p365 = pneg %p125
      %p366 = pneg %p149
      %p367 = pneg %p146
      %p368 = pneg %p170
      %p369 = pneg %p167
      %p370 = pneg %p191
      %p371 = pneg %p188
      %p372 = pneg %p212
      %p373 = pneg %p209
      %p374 = pneg %p238
      %p375 = pneg %p235
      %p376 = scmp.lt.s32.totalorder %s23, 1
      %s377 = scalar_select %p376, %s23, 1
      %s378 = smul.addr %s377, 8
      %s379 = scalar_lea.vmem %s9, %s378
      %p380 = pneg %p264
      %p381 = pneg %p261
      %p382 = scmp.lt.s32.totalorder %s23, 1
      %s383 = scalar_select %p382, %s23, 1
      %s384 = smul.addr %s383, 8
      %s385 = scalar_lea.vmem %s10, %s384
      %p386 = pneg %p290
      %p387 = pneg %p287
      %p388 = scmp.lt.s32.totalorder %s23, 1
      %s389 = scalar_select %p388, %s23, 1
      %s390 = smul.addr %s389, 8
      %s391 = scalar_lea.vmem %s11, %s390
      %s392 = smul.u32 5, %s23
      %p393 = scmp.lt.s32.totalorder %s392, 9
      %s394 = scalar_select %p393, %s392, 9
      %s395 = smul.addr %s394, 32
      %s396 = smul.addr %s395, 8
      %s397 = scalar_lea.vmem %s0, %s396
      %s398 = smul.u32 5, %s23
      %p399 = scmp.lt.s32.totalorder %s23, 1
      %s400 = scalar_select %p399, %s23, 1
      %s401 = smul.addr %s400, 8
      %s402 = scalar_lea.vmem %s9, %s401
      %p403 = scmp.lt.s32.totalorder %s23, 1
      %s404 = scalar_select %p403, %s23, 1
      %s405 = smul.addr %s404, 8
      %s406 = scalar_lea.vmem %s10, %s405
      %p407 = scmp.lt.s32.totalorder %s23, 1
      %s408 = scalar_select %p407, %s23, 1
      %s409 = smul.addr %s408, 8
      %s410 = scalar_lea.vmem %s11, %s409
      %v411 = vld [vmem:[%s397] sm:$0xff]
      %v412 = vld [vmem:[%s397 + $0x8] sm:$0xff]
      %v413 = vld [vmem:[%s397 + $0x10] sm:$0xff]
      %v414 = vld [vmem:[%s397 + $0x18] sm:$0xff]
      %v415 = vld [vmem:[%s397 + $0x20] sm:$0xff]
      %v416 = vld [vmem:[%s397 + $0x28] sm:$0xff]
      %v417 = vld [vmem:[%s397 + $0x30] sm:$0xff]
      %v418 = vld [vmem:[%s397 + $0x38] sm:$0xff]
      %v419 = vld [vmem:[%s397 + $0x40] sm:$0xff]
      %v420 = vld [vmem:[%s397 + $0x48] sm:$0xff]
      %v421 = vld [vmem:[%s397 + $0x50] sm:$0xff]
      %v422 = vld [vmem:[%s397 + $0x58] sm:$0xff]
      %v423 = vld [vmem:[%s397 + $0x60] sm:$0xff]
      %v424 = vld [vmem:[%s397 + $0x68] sm:$0xff]
      %v425 = vld [vmem:[%s397 + $0x70] sm:$0xff]
      %v426 = vld [vmem:[%s397 + $0x78] sm:$0xff]
      %v427 = vld [vmem:[%s397 + $0x80] sm:$0xff]
      %v428 = vld [vmem:[%s397 + $0x88] sm:$0xff]
      %v429 = vld [vmem:[%s397 + $0x90] sm:$0xff]
      %v430 = vld [vmem:[%s397 + $0x98] sm:$0xff]
      %v431 = vld [vmem:[%s397 + $0xa0] sm:$0xff]
      %v432 = vld [vmem:[%s397 + $0xa8] sm:$0xff]
      %v433 = vld [vmem:[%s397 + $0xb0] sm:$0xff]
      %v434 = vld [vmem:[%s397 + $0xb8] sm:$0xff]
      %v435 = vld [vmem:[%s397 + $0xc0] sm:$0xff]
      %v436 = vld [vmem:[%s397 + $0xc8] sm:$0xff]
      %v437 = vld [vmem:[%s397 + $0xd0] sm:$0xff]
      %v438 = vld [vmem:[%s397 + $0xd8] sm:$0xff]
      %v439 = vld [vmem:[%s397 + $0xe0] sm:$0xff]
      %v440 = vld [vmem:[%s397 + $0xe8] sm:$0xff]
      %v441 = vld [vmem:[%s397 + $0xf0] sm:$0xff]
      %v442 = vld [vmem:[%s397 + $0xf8] sm:$0xff]
      %v443 = vld [vmem:[%s397 + $0x100] sm:$0xff]
      %v444 = vld [vmem:[%s397 + $0x108] sm:$0xff]
      %v445 = vld [vmem:[%s397 + $0x110] sm:$0xff]
      %v446 = vld [vmem:[%s397 + $0x118] sm:$0xff]
      %v447 = vld [vmem:[%s397 + $0x120] sm:$0xff]
      %v448 = vld [vmem:[%s397 + $0x128] sm:$0xff]
      %v449 = vld [vmem:[%s397 + $0x130] sm:$0xff]
      %v450 = vld [vmem:[%s397 + $0x138] sm:$0xff]
      %v451 = vld [vmem:[%s397 + $0x140] sm:$0xff]
      %v452 = vld [vmem:[%s397 + $0x148] sm:$0xff]
      %v453 = vld [vmem:[%s397 + $0x150] sm:$0xff]
      %v454 = vld [vmem:[%s397 + $0x158] sm:$0xff]
      %v455 = vld [vmem:[%s397 + $0x160] sm:$0xff]
      %v456 = vld [vmem:[%s397 + $0x168] sm:$0xff]
      %v457 = vld [vmem:[%s397 + $0x170] sm:$0xff]
      %v458 = vld [vmem:[%s397 + $0x178] sm:$0xff]
      %v459 = vld [vmem:[%s397 + $0x180] sm:$0xff]
      %v460 = vld [vmem:[%s397 + $0x188] sm:$0xff]
      %v461 = vld [vmem:[%s397 + $0x190] sm:$0xff]
      %v462 = vld [vmem:[%s397 + $0x198] sm:$0xff]
      %v463 = vld [vmem:[%s397 + $0x1a0] sm:$0xff]
      %v464 = vld [vmem:[%s397 + $0x1a8] sm:$0xff]
      %v465 = vld [vmem:[%s397 + $0x1b0] sm:$0xff]
      %v466 = vld [vmem:[%s397 + $0x1b8] sm:$0xff]
      %v467 = vld [vmem:[%s397 + $0x1c0] sm:$0xff]
      %v468 = vld [vmem:[%s397 + $0x1c8] sm:$0xff]
      %v469 = vld [vmem:[%s397 + $0x1d0] sm:$0xff]
      %v470 = vld [vmem:[%s397 + $0x1d8] sm:$0xff]
      %v471 = vld [vmem:[%s397 + $0x1e0] sm:$0xff]
      %v472 = vld [vmem:[%s397 + $0x1e8] sm:$0xff]
      %v473 = vld [vmem:[%s397 + $0x1f0] sm:$0xff]
      %v474 = vld [vmem:[%s397 + $0x1f8] sm:$0xff]
      %v475 = vld [vmem:[%s397 + $0x200] sm:$0xff]
      %v476 = vld [vmem:[%s397 + $0x208] sm:$0xff]
      %v477 = vld [vmem:[%s397 + $0x210] sm:$0xff]
      %v478 = vld [vmem:[%s397 + $0x218] sm:$0xff]
      %v479 = vld [vmem:[%s397 + $0x220] sm:$0xff]
      %v480 = vld [vmem:[%s397 + $0x228] sm:$0xff]
      %v481 = vld [vmem:[%s397 + $0x230] sm:$0xff]
      %v482 = vld [vmem:[%s397 + $0x238] sm:$0xff]
      %v483 = vld [vmem:[%s397 + $0x240] sm:$0xff]
      %v484 = vld [vmem:[%s397 + $0x248] sm:$0xff]
      %v485 = vld [vmem:[%s397 + $0x250] sm:$0xff]
      %v486 = vld [vmem:[%s397 + $0x258] sm:$0xff]
      %v487 = vld [vmem:[%s397 + $0x260] sm:$0xff]
      %v488 = vld [vmem:[%s397 + $0x268] sm:$0xff]
      %v489 = vld [vmem:[%s397 + $0x270] sm:$0xff]
      %v490 = vld [vmem:[%s397 + $0x278] sm:$0xff]
      %v491 = vld [vmem:[%s397 + $0x280] sm:$0xff]
      %v492 = vld [vmem:[%s397 + $0x288] sm:$0xff]
      %v493 = vld [vmem:[%s397 + $0x290] sm:$0xff]
      %v494 = vld [vmem:[%s397 + $0x298] sm:$0xff]
      %v495 = vld [vmem:[%s397 + $0x2a0] sm:$0xff]
      %v496 = vld [vmem:[%s397 + $0x2a8] sm:$0xff]
      %v497 = vld [vmem:[%s397 + $0x2b0] sm:$0xff]
      %v498 = vld [vmem:[%s397 + $0x2b8] sm:$0xff]
      %v499 = vld [vmem:[%s397 + $0x2c0] sm:$0xff]
      %v500 = vld [vmem:[%s397 + $0x2c8] sm:$0xff]
      %v501 = vld [vmem:[%s397 + $0x2d0] sm:$0xff]
      %v502 = vld [vmem:[%s397 + $0x2d8] sm:$0xff]
      %v503 = vld [vmem:[%s397 + $0x2e0] sm:$0xff]
      %v504 = vld [vmem:[%s397 + $0x2e8] sm:$0xff]
      %v505 = vld [vmem:[%s397 + $0x2f0] sm:$0xff]
      %v506 = vld [vmem:[%s397 + $0x2f8] sm:$0xff]
      %v507 = vld [vmem:[%s397 + $0x300] sm:$0xff]
      %v508 = vld [vmem:[%s397 + $0x308] sm:$0xff]
      %v509 = vld [vmem:[%s397 + $0x310] sm:$0xff]
      %v510 = vld [vmem:[%s397 + $0x318] sm:$0xff]
      %v511 = vld [vmem:[%s397 + $0x320] sm:$0xff]
      %v512 = vld [vmem:[%s397 + $0x328] sm:$0xff]
      %v513 = vld [vmem:[%s397 + $0x330] sm:$0xff]
      %v514 = vld [vmem:[%s397 + $0x338] sm:$0xff]
      %v515 = vld [vmem:[%s397 + $0x340] sm:$0xff]
      %v516 = vld [vmem:[%s397 + $0x348] sm:$0xff]
      %v517 = vld [vmem:[%s397 + $0x350] sm:$0xff]
      %v518 = vld [vmem:[%s397 + $0x358] sm:$0xff]
      %v519 = vld [vmem:[%s397 + $0x360] sm:$0xff]
      %v520 = vld [vmem:[%s397 + $0x368] sm:$0xff]
      %v521 = vld [vmem:[%s397 + $0x370] sm:$0xff]
      %v522 = vld [vmem:[%s397 + $0x378] sm:$0xff]
      %v523 = vld [vmem:[%s397 + $0x380] sm:$0xff]
      %v524 = vld [vmem:[%s397 + $0x388] sm:$0xff]
      %v525 = vld [vmem:[%s397 + $0x390] sm:$0xff]
      %v526 = vld [vmem:[%s397 + $0x398] sm:$0xff]
      %v527 = vld [vmem:[%s397 + $0x3a0] sm:$0xff]
      %v528 = vld [vmem:[%s397 + $0x3a8] sm:$0xff]
      %v529 = vld [vmem:[%s397 + $0x3b0] sm:$0xff]
      %v530 = vld [vmem:[%s397 + $0x3b8] sm:$0xff]
      %v531 = vld [vmem:[%s397 + $0x3c0] sm:$0xff]
      %v532 = vld [vmem:[%s397 + $0x3c8] sm:$0xff]
      %v533 = vld [vmem:[%s397 + $0x3d0] sm:$0xff]
      %v534 = vld [vmem:[%s397 + $0x3d8] sm:$0xff]
      %v535 = vld [vmem:[%s397 + $0x3e0] sm:$0xff]
      %v536 = vld [vmem:[%s397 + $0x3e8] sm:$0xff]
      %v537 = vld [vmem:[%s397 + $0x3f0] sm:$0xff]
      %v538 = vld [vmem:[%s397 + $0x3f8] sm:$0xff]
      %v539 = vld [vmem:[%s397 + $0x400] sm:$0xff]
      %v540 = vld [vmem:[%s397 + $0x408] sm:$0xff]
      %v541 = vld [vmem:[%s397 + $0x410] sm:$0xff]
      %v542 = vld [vmem:[%s397 + $0x418] sm:$0xff]
      %v543 = vld [vmem:[%s397 + $0x420] sm:$0xff]
      %v544 = vld [vmem:[%s397 + $0x428] sm:$0xff]
      %v545 = vld [vmem:[%s397 + $0x430] sm:$0xff]
      %v546 = vld [vmem:[%s397 + $0x438] sm:$0xff]
      %v547 = vld [vmem:[%s397 + $0x440] sm:$0xff]
      %v548 = vld [vmem:[%s397 + $0x448] sm:$0xff]
      %v549 = vld [vmem:[%s397 + $0x450] sm:$0xff]
      %v550 = vld [vmem:[%s397 + $0x458] sm:$0xff]
      %v551 = vld [vmem:[%s397 + $0x460] sm:$0xff]
      %v552 = vld [vmem:[%s397 + $0x468] sm:$0xff]
      %v553 = vld [vmem:[%s397 + $0x470] sm:$0xff]
      %v554 = vld [vmem:[%s397 + $0x478] sm:$0xff]
      %v555 = vld [vmem:[%s397 + $0x480] sm:$0xff]
      %v556 = vld [vmem:[%s397 + $0x488] sm:$0xff]
      %v557 = vld [vmem:[%s397 + $0x490] sm:$0xff]
      %v558 = vld [vmem:[%s397 + $0x498] sm:$0xff]
      %v559 = vld [vmem:[%s397 + $0x4a0] sm:$0xff]
      %v560 = vld [vmem:[%s397 + $0x4a8] sm:$0xff]
      %v561 = vld [vmem:[%s397 + $0x4b0] sm:$0xff]
      %v562 = vld [vmem:[%s397 + $0x4b8] sm:$0xff]
      %v563 = vld [vmem:[%s397 + $0x4c0] sm:$0xff]
      %v564 = vld [vmem:[%s397 + $0x4c8] sm:$0xff]
      %v565 = vld [vmem:[%s397 + $0x4d0] sm:$0xff]
      %v566 = vld [vmem:[%s397 + $0x4d8] sm:$0xff]
      %v567 = vld [vmem:[%s397 + $0x4e0] sm:$0xff]
      %v568 = vld [vmem:[%s397 + $0x4e8] sm:$0xff]
      %v569 = vld [vmem:[%s397 + $0x4f0] sm:$0xff]
      %v570 = vld [vmem:[%s397 + $0x4f8] sm:$0xff]
      %v571 = vpack.c.bf16 %v412, %v411
      %v572 = vpack.c.bf16 %v414, %v413
      %v573 = vpack.c.bf16 %v416, %v415
      %v574 = vpack.c.bf16 %v418, %v417
      %v575 = vpack.c.bf16 %v420, %v419
      %v576 = vpack.c.bf16 %v422, %v421
      %v577 = vpack.c.bf16 %v424, %v423
      %v578 = vpack.c.bf16 %v426, %v425
      %v579 = vpack.c.bf16 %v428, %v427
      %v580 = vpack.c.bf16 %v430, %v429
      %v581 = vpack.c.bf16 %v432, %v431
      %v582 = vpack.c.bf16 %v434, %v433
      %v583 = vpack.c.bf16 %v436, %v435
      %v584 = vpack.c.bf16 %v438, %v437
      %v585 = vpack.c.bf16 %v440, %v439
      %v586 = vpack.c.bf16 %v442, %v441
      %v587 = vpack.c.bf16 %v444, %v443
      %v588 = vpack.c.bf16 %v446, %v445
      %v589 = vpack.c.bf16 %v448, %v447
      %v590 = vpack.c.bf16 %v450, %v449
      %v591 = vpack.c.bf16 %v452, %v451
      %v592 = vpack.c.bf16 %v454, %v453
      %v593 = vpack.c.bf16 %v456, %v455
      %v594 = vpack.c.bf16 %v458, %v457
      %v595 = vpack.c.bf16 %v460, %v459
      %v596 = vpack.c.bf16 %v462, %v461
      %v597 = vpack.c.bf16 %v464, %v463
      %v598 = vpack.c.bf16 %v466, %v465
      %v599 = vpack.c.bf16 %v468, %v467
      %v600 = vpack.c.bf16 %v470, %v469
      %v601 = vpack.c.bf16 %v472, %v471
      %v602 = vpack.c.bf16 %v474, %v473
      %v603 = vpack.c.bf16 %v476, %v475
      %v604 = vpack.c.bf16 %v478, %v477
      %v605 = vpack.c.bf16 %v480, %v479
      %v606 = vpack.c.bf16 %v482, %v481
      %v607 = vpack.c.bf16 %v484, %v483
      %v608 = vpack.c.bf16 %v486, %v485
      %v609 = vpack.c.bf16 %v488, %v487
      %v610 = vpack.c.bf16 %v490, %v489
      %v611 = vpack.c.bf16 %v492, %v491
      %v612 = vpack.c.bf16 %v494, %v493
      %v613 = vpack.c.bf16 %v496, %v495
      %v614 = vpack.c.bf16 %v498, %v497
      %v615 = vpack.c.bf16 %v500, %v499
      %v616 = vpack.c.bf16 %v502, %v501
      %v617 = vpack.c.bf16 %v504, %v503
      %v618 = vpack.c.bf16 %v506, %v505
      %v619 = vpack.c.bf16 %v508, %v507
      %v620 = vpack.c.bf16 %v510, %v509
      %v621 = vpack.c.bf16 %v512, %v511
      %v622 = vpack.c.bf16 %v514, %v513
      %v623 = vpack.c.bf16 %v516, %v515
      %v624 = vpack.c.bf16 %v518, %v517
      %v625 = vpack.c.bf16 %v520, %v519
      %v626 = vpack.c.bf16 %v522, %v521
      %v627 = vpack.c.bf16 %v524, %v523
      %v628 = vpack.c.bf16 %v526, %v525
      %v629 = vpack.c.bf16 %v528, %v527
      %v630 = vpack.c.bf16 %v530, %v529
      %v631 = vpack.c.bf16 %v532, %v531
      %v632 = vpack.c.bf16 %v534, %v533
      %v633 = vpack.c.bf16 %v536, %v535
      %v634 = vpack.c.bf16 %v538, %v537
      %v635 = vpack.c.bf16 %v540, %v539
      %v636 = vpack.c.bf16 %v542, %v541
      %v637 = vpack.c.bf16 %v544, %v543
      %v638 = vpack.c.bf16 %v546, %v545
      %v639 = vpack.c.bf16 %v548, %v547
      %v640 = vpack.c.bf16 %v550, %v549
      %v641 = vpack.c.bf16 %v552, %v551
      %v642 = vpack.c.bf16 %v554, %v553
      %v643 = vpack.c.bf16 %v556, %v555
      %v644 = vpack.c.bf16 %v558, %v557
      %v645 = vpack.c.bf16 %v560, %v559
      %v646 = vpack.c.bf16 %v562, %v561
      %v647 = vpack.c.bf16 %v564, %v563
      %v648 = vpack.c.bf16 %v566, %v565
      %v649 = vpack.c.bf16 %v568, %v567
      %v650 = vpack.c.bf16 %v570, %v569
      %v651 = vld [vmem:[%s1] sm:$0xf]
      %v652 = vld [vmem:[%s1 + $0x4] sm:$0xf]
      %v653 = vld [vmem:[%s1 + $0x8] sm:$0xf]
      %v654 = vld [vmem:[%s1 + $0xc] sm:$0xf]
      %v655 = vld [vmem:[%s1 + $0x10] sm:$0xf]
      %v656 = vld [vmem:[%s1 + $0x14] sm:$0xf]
      %v657 = vld [vmem:[%s1 + $0x18] sm:$0xf]
      %v658 = vld [vmem:[%s1 + $0x1c] sm:$0xf]
      %v659 = vld [vmem:[%s1 + $0x20] sm:$0xf]
      %v660 = vld [vmem:[%s1 + $0x24] sm:$0xf]
      %v661 = vld [vmem:[%s1 + $0x28] sm:$0xf]
      %v662 = vld [vmem:[%s1 + $0x2c] sm:$0xf]
      %v663 = vld [vmem:[%s1 + $0x30] sm:$0xf]
      %v664 = vld [vmem:[%s1 + $0x34] sm:$0xf]
      %v665 = vld [vmem:[%s1 + $0x38] sm:$0xf]
      %v666 = vld [vmem:[%s1 + $0x3c] sm:$0xf]
      %v667 = vld [vmem:[%s2] sm:$0x1]
      %v669 = vperm.slane %v667, 0
      %v687 = vunpack.c.l.b16 %v651
      %v688 = vunpack.c.l.b16 %v652
      %v689 = vunpack.c.l.b16 %v653
      %v690 = vunpack.c.l.b16 %v654
      %v691 = vunpack.c.l.b16 %v655
      %v692 = vunpack.c.l.b16 %v656
      %v693 = vunpack.c.l.b16 %v657
      %v694 = vunpack.c.l.b16 %v658
      %v695 = vunpack.c.l.b16 %v659
      %v696 = vunpack.c.l.b16 %v660
      %v697 = vunpack.c.l.b16 %v661
      %v698 = vunpack.c.l.b16 %v662
      %v699 = vunpack.c.l.b16 %v663
      %v700 = vunpack.c.l.b16 %v664
      %v701 = vunpack.c.l.b16 %v665
      %v702 = vunpack.c.l.b16 %v666
      %v703 = vpack.c.b16 %v688, %v687
      %v704 = vpack.c.b16 %v690, %v689
      %v705 = vpack.c.b16 %v692, %v691
      %v706 = vpack.c.b16 %v694, %v693
      %v707 = vpack.c.b16 %v696, %v695
      %v708 = vpack.c.b16 %v698, %v697
      %v709 = vpack.c.b16 %v700, %v699
      %v710 = vpack.c.b16 %v702, %v701
      %719 = vmatpush.bf16.msra.mxu0 %v710
      %720 = vmatpush.bf16.msra.mxu0 %v709
      %721 = vmatpush.bf16.msra.mxu0 %v708
      %722 = vmatpush.bf16.msra.mxu0 %v707
      %723 = vmatpush.bf16.msra.mxu0 %v706
      %724 = vmatpush.bf16.msra.mxu0 %v705
      %725 = vmatpush.bf16.msra.mxu0 %v704
      %726 = vmatpush.bf16.msra.mxu0 %v703
      %727 = vmatmul.bf16.gmra.mxu0 %v571
      %v728 = vpop.f32.mrf.mxu0
      %v729 = vadd.f32 %v669, %v728
      %v730 = vpop.f32.mrf.mxu0
      %v731 = vadd.f32 %v669, %v730
      %732 = vmatmul.bf16.gmra.mxu0 %v572
      %v733 = vpop.f32.mrf.mxu0
      %v734 = vadd.f32 %v669, %v733
      %v735 = vpop.f32.mrf.mxu0
      %v736 = vadd.f32 %v669, %v735
      %737 = vmatmul.bf16.gmra.mxu0 %v573
      %v738 = vpop.f32.mrf.mxu0
      %v739 = vadd.f32 %v669, %v738
      %v740 = vpop.f32.mrf.mxu0
      %v741 = vadd.f32 %v669, %v740
      %742 = vmatmul.bf16.gmra.mxu0 %v574
      %v743 = vpop.f32.mrf.mxu0
      %v744 = vadd.f32 %v669, %v743
      %v745 = vpop.f32.mrf.mxu0
      %v746 = vadd.f32 %v669, %v745
      %747 = vmatmul.bf16.gmra.mxu0 %v575
      %v748 = vpop.f32.mrf.mxu0
      %v749 = vadd.f32 %v669, %v748
      %v750 = vpop.f32.mrf.mxu0
      %v751 = vadd.f32 %v669, %v750
      %752 = vmatmul.bf16.gmra.mxu0 %v576
      %v753 = vpop.f32.mrf.mxu0
      %v754 = vadd.f32 %v669, %v753
      %v755 = vpop.f32.mrf.mxu0
      %v756 = vadd.f32 %v669, %v755
      %757 = vmatmul.bf16.gmra.mxu0 %v577
      %v758 = vpop.f32.mrf.mxu0
      %v759 = vadd.f32 %v669, %v758
      %v760 = vpop.f32.mrf.mxu0
      %v761 = vadd.f32 %v669, %v760
      %762 = vmatmul.bf16.gmra.mxu0 %v578
      %v763 = vpop.f32.mrf.mxu0
      %v764 = vadd.f32 %v669, %v763
      %v765 = vpop.f32.mrf.mxu0
      %v766 = vadd.f32 %v669, %v765
      %767 = vmatmul.bf16.gmra.mxu0 %v579
      %v768 = vpop.f32.mrf.mxu0
      %v769 = vadd.f32 %v669, %v768
      %v770 = vpop.f32.mrf.mxu0
      %v771 = vadd.f32 %v669, %v770
      %772 = vmatmul.bf16.gmra.mxu0 %v580
      %v773 = vpop.f32.mrf.mxu0
      %v774 = vadd.f32 %v669, %v773
      %v775 = vpop.f32.mrf.mxu0
      %v776 = vadd.f32 %v669, %v775
      %777 = vmatmul.bf16.gmra.mxu0 %v581
      %v778 = vpop.f32.mrf.mxu0
      %v779 = vadd.f32 %v669, %v778
      %v780 = vpop.f32.mrf.mxu0
      %v781 = vadd.f32 %v669, %v780
      %782 = vmatmul.bf16.gmra.mxu0 %v582
      %v783 = vpop.f32.mrf.mxu0
      %v784 = vadd.f32 %v669, %v783
      %v785 = vpop.f32.mrf.mxu0
      %v786 = vadd.f32 %v669, %v785
      %787 = vmatmul.bf16.gmra.mxu0 %v583
      %v788 = vpop.f32.mrf.mxu0
      %v789 = vadd.f32 %v669, %v788
      %v790 = vpop.f32.mrf.mxu0
      %v791 = vadd.f32 %v669, %v790
      %792 = vmatmul.bf16.gmra.mxu0 %v584
      %v793 = vpop.f32.mrf.mxu0
      %v794 = vadd.f32 %v669, %v793
      %v795 = vpop.f32.mrf.mxu0
      %v796 = vadd.f32 %v669, %v795
      %797 = vmatmul.bf16.gmra.mxu0 %v585
      %v798 = vpop.f32.mrf.mxu0
      %v799 = vadd.f32 %v669, %v798
      %v800 = vpop.f32.mrf.mxu0
      %v801 = vadd.f32 %v669, %v800
      %802 = vmatmul.bf16.gmra.mxu0 %v586
      %v803 = vpop.f32.mrf.mxu0
      %v804 = vadd.f32 %v669, %v803
      %v805 = vpop.f32.mrf.mxu0
      %v806 = vadd.f32 %v669, %v805
      %807 = vmatmul.bf16.gmra.mxu0 %v587
      %v808 = vpop.f32.mrf.mxu0
      %v809 = vadd.f32 %v669, %v808
      %v810 = vpop.f32.mrf.mxu0
      %v811 = vadd.f32 %v669, %v810
      %812 = vmatmul.bf16.gmra.mxu0 %v588
      %v813 = vpop.f32.mrf.mxu0
      %v814 = vadd.f32 %v669, %v813
      %v815 = vpop.f32.mrf.mxu0
      %v816 = vadd.f32 %v669, %v815
      %817 = vmatmul.bf16.gmra.mxu0 %v589
      %v818 = vpop.f32.mrf.mxu0
      %v819 = vadd.f32 %v669, %v818
      %v820 = vpop.f32.mrf.mxu0
      %v821 = vadd.f32 %v669, %v820
      %822 = vmatmul.bf16.gmra.mxu0 %v590
      %v823 = vpop.f32.mrf.mxu0
      %v824 = vadd.f32 %v669, %v823
      %v825 = vpop.f32.mrf.mxu0
      %v826 = vadd.f32 %v669, %v825
      %827 = vmatmul.bf16.gmra.mxu0 %v591
      %v828 = vpop.f32.mrf.mxu0
      %v829 = vadd.f32 %v669, %v828
      %v830 = vpop.f32.mrf.mxu0
      %v831 = vadd.f32 %v669, %v830
      %832 = vmatmul.bf16.gmra.mxu0 %v592
      %v833 = vpop.f32.mrf.mxu0
      %v834 = vadd.f32 %v669, %v833
      %v835 = vpop.f32.mrf.mxu0
      %v836 = vadd.f32 %v669, %v835
      %837 = vmatmul.bf16.gmra.mxu0 %v593
      %v838 = vpop.f32.mrf.mxu0
      %v839 = vadd.f32 %v669, %v838
      %v840 = vpop.f32.mrf.mxu0
      %v841 = vadd.f32 %v669, %v840
      %842 = vmatmul.bf16.gmra.mxu0 %v594
      %v843 = vpop.f32.mrf.mxu0
      %v844 = vadd.f32 %v669, %v843
      %v845 = vpop.f32.mrf.mxu0
      %v846 = vadd.f32 %v669, %v845
      %847 = vmatmul.bf16.gmra.mxu0 %v595
      %v848 = vpop.f32.mrf.mxu0
      %v849 = vadd.f32 %v669, %v848
      %v850 = vpop.f32.mrf.mxu0
      %v851 = vadd.f32 %v669, %v850
      %852 = vmatmul.bf16.gmra.mxu0 %v596
      %v853 = vpop.f32.mrf.mxu0
      %v854 = vadd.f32 %v669, %v853
      %v855 = vpop.f32.mrf.mxu0
      %v856 = vadd.f32 %v669, %v855
      %857 = vmatmul.bf16.gmra.mxu0 %v597
      %v858 = vpop.f32.mrf.mxu0
      %v859 = vadd.f32 %v669, %v858
      %v860 = vpop.f32.mrf.mxu0
      %v861 = vadd.f32 %v669, %v860
      %862 = vmatmul.bf16.gmra.mxu0 %v598
      %v863 = vpop.f32.mrf.mxu0
      %v864 = vadd.f32 %v669, %v863
      %v865 = vpop.f32.mrf.mxu0
      %v866 = vadd.f32 %v669, %v865
      %867 = vmatmul.bf16.gmra.mxu0 %v599
      %v868 = vpop.f32.mrf.mxu0
      %v869 = vadd.f32 %v669, %v868
      %v870 = vpop.f32.mrf.mxu0
      %v871 = vadd.f32 %v669, %v870
      %872 = vmatmul.bf16.gmra.mxu0 %v600
      %v873 = vpop.f32.mrf.mxu0
      %v874 = vadd.f32 %v669, %v873
      %v875 = vpop.f32.mrf.mxu0
      %v876 = vadd.f32 %v669, %v875
      %877 = vmatmul.bf16.gmra.mxu0 %v601
      %v878 = vpop.f32.mrf.mxu0
      %v879 = vadd.f32 %v669, %v878
      %v880 = vpop.f32.mrf.mxu0
      %v881 = vadd.f32 %v669, %v880
      %882 = vmatmul.bf16.gmra.mxu0 %v602
      %v883 = vpop.f32.mrf.mxu0
      %v884 = vadd.f32 %v669, %v883
      %v885 = vpop.f32.mrf.mxu0
      %v886 = vadd.f32 %v669, %v885
      %887 = vmatmul.bf16.gmra.mxu0 %v603
      %v888 = vpop.f32.mrf.mxu0
      %v889 = vadd.f32 %v669, %v888
      %v890 = vpop.f32.mrf.mxu0
      %v891 = vadd.f32 %v669, %v890
      %892 = vmatmul.bf16.gmra.mxu0 %v604
      %v893 = vpop.f32.mrf.mxu0
      %v894 = vadd.f32 %v669, %v893
      %v895 = vpop.f32.mrf.mxu0
      %v896 = vadd.f32 %v669, %v895
      %897 = vmatmul.bf16.gmra.mxu0 %v605
      %v898 = vpop.f32.mrf.mxu0
      %v899 = vadd.f32 %v669, %v898
      %v900 = vpop.f32.mrf.mxu0
      %v901 = vadd.f32 %v669, %v900
      %902 = vmatmul.bf16.gmra.mxu0 %v606
      %v903 = vpop.f32.mrf.mxu0
      %v904 = vadd.f32 %v669, %v903
      %v905 = vpop.f32.mrf.mxu0
      %v906 = vadd.f32 %v669, %v905
      %907 = vmatmul.bf16.gmra.mxu0 %v607
      %v908 = vpop.f32.mrf.mxu0
      %v909 = vadd.f32 %v669, %v908
      %v910 = vpop.f32.mrf.mxu0
      %v911 = vadd.f32 %v669, %v910
      %912 = vmatmul.bf16.gmra.mxu0 %v608
      %v913 = vpop.f32.mrf.mxu0
      %v914 = vadd.f32 %v669, %v913
      %v915 = vpop.f32.mrf.mxu0
      %v916 = vadd.f32 %v669, %v915
      %917 = vmatmul.bf16.gmra.mxu0 %v609
      %v918 = vpop.f32.mrf.mxu0
      %v919 = vadd.f32 %v669, %v918
      %v920 = vpop.f32.mrf.mxu0
      %v921 = vadd.f32 %v669, %v920
      %922 = vmatmul.bf16.gmra.mxu0 %v610
      %v923 = vpop.f32.mrf.mxu0
      %v924 = vadd.f32 %v669, %v923
      %v925 = vpop.f32.mrf.mxu0
      %v926 = vadd.f32 %v669, %v925
      %927 = vmatmul.bf16.gmra.mxu0 %v611
      %v928 = vpop.f32.mrf.mxu0
      %v929 = vadd.f32 %v669, %v928
      %v930 = vpop.f32.mrf.mxu0
      %v931 = vadd.f32 %v669, %v930
      %932 = vmatmul.bf16.gmra.mxu0 %v612
      %v933 = vpop.f32.mrf.mxu0
      %v934 = vadd.f32 %v669, %v933
      %v935 = vpop.f32.mrf.mxu0
      %v936 = vadd.f32 %v669, %v935
      %937 = vmatmul.bf16.gmra.mxu0 %v613
      %v938 = vpop.f32.mrf.mxu0
      %v939 = vadd.f32 %v669, %v938
      %v940 = vpop.f32.mrf.mxu0
      %v941 = vadd.f32 %v669, %v940
      %942 = vmatmul.bf16.gmra.mxu0 %v614
      %v943 = vpop.f32.mrf.mxu0
      %v944 = vadd.f32 %v669, %v943
      %v945 = vpop.f32.mrf.mxu0
      %v946 = vadd.f32 %v669, %v945
      %947 = vmatmul.bf16.gmra.mxu0 %v615
      %v948 = vpop.f32.mrf.mxu0
      %v949 = vadd.f32 %v669, %v948
      %v950 = vpop.f32.mrf.mxu0
      %v951 = vadd.f32 %v669, %v950
      %952 = vmatmul.bf16.gmra.mxu0 %v616
      %v953 = vpop.f32.mrf.mxu0
      %v954 = vadd.f32 %v669, %v953
      %v955 = vpop.f32.mrf.mxu0
      %v956 = vadd.f32 %v669, %v955
      %957 = vmatmul.bf16.gmra.mxu0 %v617
      %v958 = vpop.f32.mrf.mxu0
      %v959 = vadd.f32 %v669, %v958
      %v960 = vpop.f32.mrf.mxu0
      %v961 = vadd.f32 %v669, %v960
      %962 = vmatmul.bf16.gmra.mxu0 %v618
      %v963 = vpop.f32.mrf.mxu0
      %v964 = vadd.f32 %v669, %v963
      %v965 = vpop.f32.mrf.mxu0
      %v966 = vadd.f32 %v669, %v965
      %967 = vmatmul.bf16.gmra.mxu0 %v619
      %v968 = vpop.f32.mrf.mxu0
      %v969 = vadd.f32 %v669, %v968
      %v970 = vpop.f32.mrf.mxu0
      %v971 = vadd.f32 %v669, %v970
      %972 = vmatmul.bf16.gmra.mxu0 %v620
      %v973 = vpop.f32.mrf.mxu0
      %v974 = vadd.f32 %v669, %v973
      %v975 = vpop.f32.mrf.mxu0
      %v976 = vadd.f32 %v669, %v975
      %977 = vmatmul.bf16.gmra.mxu0 %v621
      %v978 = vpop.f32.mrf.mxu0
      %v979 = vadd.f32 %v669, %v978
      %v980 = vpop.f32.mrf.mxu0
      %v981 = vadd.f32 %v669, %v980
      %982 = vmatmul.bf16.gmra.mxu0 %v622
      %v983 = vpop.f32.mrf.mxu0
      %v984 = vadd.f32 %v669, %v983
      %v985 = vpop.f32.mrf.mxu0
      %v986 = vadd.f32 %v669, %v985
      %987 = vmatmul.bf16.gmra.mxu0 %v623
      %v988 = vpop.f32.mrf.mxu0
      %v989 = vadd.f32 %v669, %v988
      %v990 = vpop.f32.mrf.mxu0
      %v991 = vadd.f32 %v669, %v990
      %992 = vmatmul.bf16.gmra.mxu0 %v624
      %v993 = vpop.f32.mrf.mxu0
      %v994 = vadd.f32 %v669, %v993
      %v995 = vpop.f32.mrf.mxu0
      %v996 = vadd.f32 %v669, %v995
      %997 = vmatmul.bf16.gmra.mxu0 %v625
      %v998 = vpop.f32.mrf.mxu0
      %v999 = vadd.f32 %v669, %v998
      %v1000 = vpop.f32.mrf.mxu0
      %v1001 = vadd.f32 %v669, %v1000
      %1002 = vmatmul.bf16.gmra.mxu0 %v626
      %v1003 = vpop.f32.mrf.mxu0
      %v1004 = vadd.f32 %v669, %v1003
      %v1005 = vpop.f32.mrf.mxu0
      %v1006 = vadd.f32 %v669, %v1005
      %1007 = vmatmul.bf16.gmra.mxu0 %v627
      %v1008 = vpop.f32.mrf.mxu0
      %v1009 = vadd.f32 %v669, %v1008
      %v1010 = vpop.f32.mrf.mxu0
      %v1011 = vadd.f32 %v669, %v1010
      %1012 = vmatmul.bf16.gmra.mxu0 %v628
      %v1013 = vpop.f32.mrf.mxu0
      %v1014 = vadd.f32 %v669, %v1013
      %v1015 = vpop.f32.mrf.mxu0
      %v1016 = vadd.f32 %v669, %v1015
      %1017 = vmatmul.bf16.gmra.mxu0 %v629
      %v1018 = vpop.f32.mrf.mxu0
      %v1019 = vadd.f32 %v669, %v1018
      %v1020 = vpop.f32.mrf.mxu0
      %v1021 = vadd.f32 %v669, %v1020
      %1022 = vmatmul.bf16.gmra.mxu0 %v630
      %v1023 = vpop.f32.mrf.mxu0
      %v1024 = vadd.f32 %v669, %v1023
      %v1025 = vpop.f32.mrf.mxu0
      %v1026 = vadd.f32 %v669, %v1025
      %1027 = vmatmul.bf16.gmra.mxu0 %v631
      %v1028 = vpop.f32.mrf.mxu0
      %v1029 = vadd.f32 %v669, %v1028
      %v1030 = vpop.f32.mrf.mxu0
      %v1031 = vadd.f32 %v669, %v1030
      %1032 = vmatmul.bf16.gmra.mxu0 %v632
      %v1033 = vpop.f32.mrf.mxu0
      %v1034 = vadd.f32 %v669, %v1033
      %v1035 = vpop.f32.mrf.mxu0
      %v1036 = vadd.f32 %v669, %v1035
      %1037 = vmatmul.bf16.gmra.mxu0 %v633
      %v1038 = vpop.f32.mrf.mxu0
      %v1039 = vadd.f32 %v669, %v1038
      %v1040 = vpop.f32.mrf.mxu0
      %v1041 = vadd.f32 %v669, %v1040
      %1042 = vmatmul.bf16.gmra.mxu0 %v634
      %v1043 = vpop.f32.mrf.mxu0
      %v1044 = vadd.f32 %v669, %v1043
      %v1045 = vpop.f32.mrf.mxu0
      %v1046 = vadd.f32 %v669, %v1045
      %1047 = vmatmul.bf16.gmra.mxu0 %v635
      %v1048 = vpop.f32.mrf.mxu0
      %v1049 = vadd.f32 %v669, %v1048
      %v1050 = vpop.f32.mrf.mxu0
      %v1051 = vadd.f32 %v669, %v1050
      %1052 = vmatmul.bf16.gmra.mxu0 %v636
      %v1053 = vpop.f32.mrf.mxu0
      %v1054 = vadd.f32 %v669, %v1053
      %v1055 = vpop.f32.mrf.mxu0
      %v1056 = vadd.f32 %v669, %v1055
      %1057 = vmatmul.bf16.gmra.mxu0 %v637
      %v1058 = vpop.f32.mrf.mxu0
      %v1059 = vadd.f32 %v669, %v1058
      %v1060 = vpop.f32.mrf.mxu0
      %v1061 = vadd.f32 %v669, %v1060
      %1062 = vmatmul.bf16.gmra.mxu0 %v638
      %v1063 = vpop.f32.mrf.mxu0
      %v1064 = vadd.f32 %v669, %v1063
      %v1065 = vpop.f32.mrf.mxu0
      %v1066 = vadd.f32 %v669, %v1065
      %1067 = vmatmul.bf16.gmra.mxu0 %v639
      %v1068 = vpop.f32.mrf.mxu0
      %v1069 = vadd.f32 %v669, %v1068
      %v1070 = vpop.f32.mrf.mxu0
      %v1071 = vadd.f32 %v669, %v1070
      %1072 = vmatmul.bf16.gmra.mxu0 %v640
      %v1073 = vpop.f32.mrf.mxu0
      %v1074 = vadd.f32 %v669, %v1073
      %v1075 = vpop.f32.mrf.mxu0
      %v1076 = vadd.f32 %v669, %v1075
      %1077 = vmatmul.bf16.gmra.mxu0 %v641
      %v1078 = vpop.f32.mrf.mxu0
      %v1079 = vadd.f32 %v669, %v1078
      %v1080 = vpop.f32.mrf.mxu0
      %v1081 = vadd.f32 %v669, %v1080
      %1082 = vmatmul.bf16.gmra.mxu0 %v642
      %v1083 = vpop.f32.mrf.mxu0
      %v1084 = vadd.f32 %v669, %v1083
      %v1085 = vpop.f32.mrf.mxu0
      %v1086 = vadd.f32 %v669, %v1085
      %1087 = vmatmul.bf16.gmra.mxu0 %v643
      %v1088 = vpop.f32.mrf.mxu0
      %v1089 = vadd.f32 %v669, %v1088
      %v1090 = vpop.f32.mrf.mxu0
      %v1091 = vadd.f32 %v669, %v1090
      %1092 = vmatmul.bf16.gmra.mxu0 %v644
      %v1093 = vpop.f32.mrf.mxu0
      %v1094 = vadd.f32 %v669, %v1093
      %v1095 = vpop.f32.mrf.mxu0
      %v1096 = vadd.f32 %v669, %v1095
      %1097 = vmatmul.bf16.gmra.mxu0 %v645
      %v1098 = vpop.f32.mrf.mxu0
      %v1099 = vadd.f32 %v669, %v1098
      %v1100 = vpop.f32.mrf.mxu0
      %v1101 = vadd.f32 %v669, %v1100
      %1102 = vmatmul.bf16.gmra.mxu0 %v646
      %v1103 = vpop.f32.mrf.mxu0
      %v1104 = vadd.f32 %v669, %v1103
      %v1105 = vpop.f32.mrf.mxu0
      %v1106 = vadd.f32 %v669, %v1105
      %1107 = vmatmul.bf16.gmra.mxu0 %v647
      %v1108 = vpop.f32.mrf.mxu0
      %v1109 = vadd.f32 %v669, %v1108
      %v1110 = vpop.f32.mrf.mxu0
      %v1111 = vadd.f32 %v669, %v1110
      %1112 = vmatmul.bf16.gmra.mxu0 %v648
      %v1113 = vpop.f32.mrf.mxu0
      %v1114 = vadd.f32 %v669, %v1113
      %v1115 = vpop.f32.mrf.mxu0
      %v1116 = vadd.f32 %v669, %v1115
      %1117 = vmatmul.bf16.gmra.mxu0 %v649
      %v1118 = vpop.f32.mrf.mxu0
      %v1119 = vadd.f32 %v669, %v1118
      %v1120 = vpop.f32.mrf.mxu0
      %v1121 = vadd.f32 %v669, %v1120
      %1122 = vmatmul.bf16.gmra.mxu0 %v650
      %v1123 = vpop.f32.mrf.mxu0
      %v1124 = vadd.f32 %v669, %v1123
      %v1125 = vpop.f32.mrf.mxu0
      %v1126 = vadd.f32 %v669, %v1125
      %1127 = vdwg.mxu0
      %v1128 = vmax.f32 %v729, 0.0
      %v1129 = vmax.f32 %v731, 0.0
      %v1130 = vmax.f32 %v734, 0.0
      %v1131 = vmax.f32 %v736, 0.0
      %v1132 = vmax.f32 %v739, 0.0
      %v1133 = vmax.f32 %v741, 0.0
      %v1134 = vmax.f32 %v744, 0.0
      %v1135 = vmax.f32 %v746, 0.0
      %v1136 = vmax.f32 %v749, 0.0
      %v1137 = vmax.f32 %v751, 0.0
      %v1138 = vmax.f32 %v754, 0.0
      %v1139 = vmax.f32 %v756, 0.0
      %v1140 = vmax.f32 %v759, 0.0
      %v1141 = vmax.f32 %v761, 0.0
      %v1142 = vmax.f32 %v764, 0.0
      %v1143 = vmax.f32 %v766, 0.0
      %v1144 = vmax.f32 %v769, 0.0
      %v1145 = vmax.f32 %v771, 0.0
      %v1146 = vmax.f32 %v774, 0.0
      %v1147 = vmax.f32 %v776, 0.0
      %v1148 = vmax.f32 %v779, 0.0
      %v1149 = vmax.f32 %v781, 0.0
      %v1150 = vmax.f32 %v784, 0.0
      %v1151 = vmax.f32 %v786, 0.0
      %v1152 = vmax.f32 %v789, 0.0
      %v1153 = vmax.f32 %v791, 0.0
      %v1154 = vmax.f32 %v794, 0.0
      %v1155 = vmax.f32 %v796, 0.0
      %v1156 = vmax.f32 %v799, 0.0
      %v1157 = vmax.f32 %v801, 0.0
      %v1158 = vmax.f32 %v804, 0.0
      %v1159 = vmax.f32 %v806, 0.0
      %v1160 = vmax.f32 %v809, 0.0
      %v1161 = vmax.f32 %v811, 0.0
      %v1162 = vmax.f32 %v814, 0.0
      %v1163 = vmax.f32 %v816, 0.0
      %v1164 = vmax.f32 %v819, 0.0
      %v1165 = vmax.f32 %v821, 0.0
      %v1166 = vmax.f32 %v824, 0.0
      %v1167 = vmax.f32 %v826, 0.0
      %v1168 = vmax.f32 %v829, 0.0
      %v1169 = vmax.f32 %v831, 0.0
      %v1170 = vmax.f32 %v834, 0.0
      %v1171 = vmax.f32 %v836, 0.0
      %v1172 = vmax.f32 %v839, 0.0
      %v1173 = vmax.f32 %v841, 0.0
      %v1174 = vmax.f32 %v844, 0.0
      %v1175 = vmax.f32 %v846, 0.0
      %v1176 = vmax.f32 %v849, 0.0
      %v1177 = vmax.f32 %v851, 0.0
      %v1178 = vmax.f32 %v854, 0.0
      %v1179 = vmax.f32 %v856, 0.0
      %v1180 = vmax.f32 %v859, 0.0
      %v1181 = vmax.f32 %v861, 0.0
      %v1182 = vmax.f32 %v864, 0.0
      %v1183 = vmax.f32 %v866, 0.0
      %v1184 = vmax.f32 %v869, 0.0
      %v1185 = vmax.f32 %v871, 0.0
      %v1186 = vmax.f32 %v874, 0.0
      %v1187 = vmax.f32 %v876, 0.0
      %v1188 = vmax.f32 %v879, 0.0
      %v1189 = vmax.f32 %v881, 0.0
      %v1190 = vmax.f32 %v884, 0.0
      %v1191 = vmax.f32 %v886, 0.0
      %v1192 = vmax.f32 %v889, 0.0
      %v1193 = vmax.f32 %v891, 0.0
      %v1194 = vmax.f32 %v894, 0.0
      %v1195 = vmax.f32 %v896, 0.0
      %v1196 = vmax.f32 %v899, 0.0
      %v1197 = vmax.f32 %v901, 0.0
      %v1198 = vmax.f32 %v904, 0.0
      %v1199 = vmax.f32 %v906, 0.0
      %v1200 = vmax.f32 %v909, 0.0
      %v1201 = vmax.f32 %v911, 0.0
      %v1202 = vmax.f32 %v914, 0.0
      %v1203 = vmax.f32 %v916, 0.0
      %v1204 = vmax.f32 %v919, 0.0
      %v1205 = vmax.f32 %v921, 0.0
      %v1206 = vmax.f32 %v924, 0.0
      %v1207 = vmax.f32 %v926, 0.0
      %v1208 = vmax.f32 %v929, 0.0
      %v1209 = vmax.f32 %v931, 0.0
      %v1210 = vmax.f32 %v934, 0.0
      %v1211 = vmax.f32 %v936, 0.0
      %v1212 = vmax.f32 %v939, 0.0
      %v1213 = vmax.f32 %v941, 0.0
      %v1214 = vmax.f32 %v944, 0.0
      %v1215 = vmax.f32 %v946, 0.0
      %v1216 = vmax.f32 %v949, 0.0
      %v1217 = vmax.f32 %v951, 0.0
      %v1218 = vmax.f32 %v954, 0.0
      %v1219 = vmax.f32 %v956, 0.0
      %v1220 = vmax.f32 %v959, 0.0
      %v1221 = vmax.f32 %v961, 0.0
      %v1222 = vmax.f32 %v964, 0.0
      %v1223 = vmax.f32 %v966, 0.0
      %v1224 = vmax.f32 %v969, 0.0
      %v1225 = vmax.f32 %v971, 0.0
      %v1226 = vmax.f32 %v974, 0.0
      %v1227 = vmax.f32 %v976, 0.0
      %v1228 = vmax.f32 %v979, 0.0
      %v1229 = vmax.f32 %v981, 0.0
      %v1230 = vmax.f32 %v984, 0.0
      %v1231 = vmax.f32 %v986, 0.0
      %v1232 = vmax.f32 %v989, 0.0
      %v1233 = vmax.f32 %v991, 0.0
      %v1234 = vmax.f32 %v994, 0.0
      %v1235 = vmax.f32 %v996, 0.0
      %v1236 = vmax.f32 %v999, 0.0
      %v1237 = vmax.f32 %v1001, 0.0
      %v1238 = vmax.f32 %v1004, 0.0
      %v1239 = vmax.f32 %v1006, 0.0
      %v1240 = vmax.f32 %v1009, 0.0
      %v1241 = vmax.f32 %v1011, 0.0
      %v1242 = vmax.f32 %v1014, 0.0
      %v1243 = vmax.f32 %v1016, 0.0
      %v1244 = vmax.f32 %v1019, 0.0
      %v1245 = vmax.f32 %v1021, 0.0
      %v1246 = vmax.f32 %v1024, 0.0
      %v1247 = vmax.f32 %v1026, 0.0
      %v1248 = vmax.f32 %v1029, 0.0
      %v1249 = vmax.f32 %v1031, 0.0
      %v1250 = vmax.f32 %v1034, 0.0
      %v1251 = vmax.f32 %v1036, 0.0
      %v1252 = vmax.f32 %v1039, 0.0
      %v1253 = vmax.f32 %v1041, 0.0
      %v1254 = vmax.f32 %v1044, 0.0
      %v1255 = vmax.f32 %v1046, 0.0
      %v1256 = vmax.f32 %v1049, 0.0
      %v1257 = vmax.f32 %v1051, 0.0
      %v1258 = vmax.f32 %v1054, 0.0
      %v1259 = vmax.f32 %v1056, 0.0
      %v1260 = vmax.f32 %v1059, 0.0
      %v1261 = vmax.f32 %v1061, 0.0
      %v1262 = vmax.f32 %v1064, 0.0
      %v1263 = vmax.f32 %v1066, 0.0
      %v1264 = vmax.f32 %v1069, 0.0
      %v1265 = vmax.f32 %v1071, 0.0
      %v1266 = vmax.f32 %v1074, 0.0
      %v1267 = vmax.f32 %v1076, 0.0
      %v1268 = vmax.f32 %v1079, 0.0
      %v1269 = vmax.f32 %v1081, 0.0
      %v1270 = vmax.f32 %v1084, 0.0
      %v1271 = vmax.f32 %v1086, 0.0
      %v1272 = vmax.f32 %v1089, 0.0
      %v1273 = vmax.f32 %v1091, 0.0
      %v1274 = vmax.f32 %v1094, 0.0
      %v1275 = vmax.f32 %v1096, 0.0
      %v1276 = vmax.f32 %v1099, 0.0
      %v1277 = vmax.f32 %v1101, 0.0
      %v1278 = vmax.f32 %v1104, 0.0
      %v1279 = vmax.f32 %v1106, 0.0
      %v1280 = vmax.f32 %v1109, 0.0
      %v1281 = vmax.f32 %v1111, 0.0
      %v1282 = vmax.f32 %v1114, 0.0
      %v1283 = vmax.f32 %v1116, 0.0
      %v1284 = vmax.f32 %v1119, 0.0
      %v1285 = vmax.f32 %v1121, 0.0
      %v1286 = vmax.f32 %v1124, 0.0
      %v1287 = vmax.f32 %v1126, 0.0
      %v1288 = vadd.f32 %v1128, %v1129
      %v1289 = vadd.f32 %v1288, %v1130
      %v1290 = vadd.f32 %v1289, %v1131
      %v1291 = vadd.f32 %v1290, %v1132
      %v1292 = vadd.f32 %v1291, %v1133
      %v1293 = vadd.f32 %v1292, %v1134
      %v1294 = vadd.f32 %v1293, %v1135
      %v1295 = vadd.f32 %v1294, %v1136
      %v1296 = vadd.f32 %v1295, %v1137
      %v1297 = vadd.f32 %v1296, %v1138
      %v1298 = vadd.f32 %v1297, %v1139
      %v1299 = vadd.f32 %v1298, %v1140
      %v1300 = vadd.f32 %v1299, %v1141
      %v1301 = vadd.f32 %v1300, %v1142
      %v1302 = vadd.f32 %v1301, %v1143
      %v1303 = vadd.f32 %v1302, %v1144
      %v1304 = vadd.f32 %v1303, %v1145
      %v1305 = vadd.f32 %v1304, %v1146
      %v1306 = vadd.f32 %v1305, %v1147
      %v1307 = vadd.f32 %v1306, %v1148
      %v1308 = vadd.f32 %v1307, %v1149
      %v1309 = vadd.f32 %v1308, %v1150
      %v1310 = vadd.f32 %v1309, %v1151
      %v1311 = vadd.f32 %v1310, %v1152
      %v1312 = vadd.f32 %v1311, %v1153
      %v1313 = vadd.f32 %v1312, %v1154
      %v1314 = vadd.f32 %v1313, %v1155
      %v1315 = vadd.f32 %v1314, %v1156
      %v1316 = vadd.f32 %v1315, %v1157
      %v1317 = vadd.f32 %v1316, %v1158
      %v1318 = vadd.f32 %v1317, %v1159
      %v1319 = vrot.slane %v1318, 4
      %v1320 = vadd.f32 %v1318, %v1319
      %v1321 = vrot.slane %v1320, 2
      %v1322 = vadd.f32 %v1320, %v1321
      %v1323 = vrot.slane %v1322, 1
      %v1324 = vadd.f32 %v1322, %v1323
      %v1325 = vadd.f32 %v1160, %v1161
      %v1326 = vadd.f32 %v1325, %v1162
      %v1327 = vadd.f32 %v1326, %v1163
      %v1328 = vadd.f32 %v1327, %v1164
      %v1329 = vadd.f32 %v1328, %v1165
      %v1330 = vadd.f32 %v1329, %v1166
      %v1331 = vadd.f32 %v1330, %v1167
      %v1332 = vadd.f32 %v1331, %v1168
      %v1333 = vadd.f32 %v1332, %v1169
      %v1334 = vadd.f32 %v1333, %v1170
      %v1335 = vadd.f32 %v1334, %v1171
      %v1336 = vadd.f32 %v1335, %v1172
      %v1337 = vadd.f32 %v1336, %v1173
      %v1338 = vadd.f32 %v1337, %v1174
      %v1339 = vadd.f32 %v1338, %v1175
      %v1340 = vadd.f32 %v1339, %v1176
      %v1341 = vadd.f32 %v1340, %v1177
      %v1342 = vadd.f32 %v1341, %v1178
      %v1343 = vadd.f32 %v1342, %v1179
      %v1344 = vadd.f32 %v1343, %v1180
      %v1345 = vadd.f32 %v1344, %v1181
      %v1346 = vadd.f32 %v1345, %v1182
      %v1347 = vadd.f32 %v1346, %v1183
      %v1348 = vadd.f32 %v1347, %v1184
      %v1349 = vadd.f32 %v1348, %v1185
      %v1350 = vadd.f32 %v1349, %v1186
      %v1351 = vadd.f32 %v1350, %v1187
      %v1352 = vadd.f32 %v1351, %v1188
      %v1353 = vadd.f32 %v1352, %v1189
      %v1354 = vadd.f32 %v1353, %v1190
      %v1355 = vadd.f32 %v1354, %v1191
      %v1356 = vrot.slane %v1355, 4
      %v1357 = vadd.f32 %v1355, %v1356
      %v1358 = vrot.slane %v1357, 2
      %v1359 = vadd.f32 %v1357, %v1358
      %v1360 = vrot.slane %v1359, 1
      %v1361 = vadd.f32 %v1359, %v1360
      %v1362 = vadd.f32 %v1192, %v1193
      %v1363 = vadd.f32 %v1362, %v1194
      %v1364 = vadd.f32 %v1363, %v1195
      %v1365 = vadd.f32 %v1364, %v1196
      %v1366 = vadd.f32 %v1365, %v1197
      %v1367 = vadd.f32 %v1366, %v1198
      %v1368 = vadd.f32 %v1367, %v1199
      %v1369 = vadd.f32 %v1368, %v1200
      %v1370 = vadd.f32 %v1369, %v1201
      %v1371 = vadd.f32 %v1370, %v1202
      %v1372 = vadd.f32 %v1371, %v1203
      %v1373 = vadd.f32 %v1372, %v1204
      %v1374 = vadd.f32 %v1373, %v1205
      %v1375 = vadd.f32 %v1374, %v1206
      %v1376 = vadd.f32 %v1375, %v1207
      %v1377 = vadd.f32 %v1376, %v1208
      %v1378 = vadd.f32 %v1377, %v1209
      %v1379 = vadd.f32 %v1378, %v1210
      %v1380 = vadd.f32 %v1379, %v1211
      %v1381 = vadd.f32 %v1380, %v1212
      %v1382 = vadd.f32 %v1381, %v1213
      %v1383 = vadd.f32 %v1382, %v1214
      %v1384 = vadd.f32 %v1383, %v1215
      %v1385 = vadd.f32 %v1384, %v1216
      %v1386 = vadd.f32 %v1385, %v1217
      %v1387 = vadd.f32 %v1386, %v1218
      %v1388 = vadd.f32 %v1387, %v1219
      %v1389 = vadd.f32 %v1388, %v1220
      %v1390 = vadd.f32 %v1389, %v1221
      %v1391 = vadd.f32 %v1390, %v1222
      %v1392 = vadd.f32 %v1391, %v1223
      %v1393 = vrot.slane %v1392, 4
      %v1394 = vadd.f32 %v1392, %v1393
      %v1395 = vrot.slane %v1394, 2
      %v1396 = vadd.f32 %v1394, %v1395
      %v1397 = vrot.slane %v1396, 1
      %v1398 = vadd.f32 %v1396, %v1397
      %v1399 = vadd.f32 %v1224, %v1225
      %v1400 = vadd.f32 %v1399, %v1226
      %v1401 = vadd.f32 %v1400, %v1227
      %v1402 = vadd.f32 %v1401, %v1228
      %v1403 = vadd.f32 %v1402, %v1229
      %v1404 = vadd.f32 %v1403, %v1230
      %v1405 = vadd.f32 %v1404, %v1231
      %v1406 = vadd.f32 %v1405, %v1232
      %v1407 = vadd.f32 %v1406, %v1233
      %v1408 = vadd.f32 %v1407, %v1234
      %v1409 = vadd.f32 %v1408, %v1235
      %v1410 = vadd.f32 %v1409, %v1236
      %v1411 = vadd.f32 %v1410, %v1237
      %v1412 = vadd.f32 %v1411, %v1238
      %v1413 = vadd.f32 %v1412, %v1239
      %v1414 = vadd.f32 %v1413, %v1240
      %v1415 = vadd.f32 %v1414, %v1241
      %v1416 = vadd.f32 %v1415, %v1242
      %v1417 = vadd.f32 %v1416, %v1243
      %v1418 = vadd.f32 %v1417, %v1244
      %v1419 = vadd.f32 %v1418, %v1245
      %v1420 = vadd.f32 %v1419, %v1246
      %v1421 = vadd.f32 %v1420, %v1247
      %v1422 = vadd.f32 %v1421, %v1248
      %v1423 = vadd.f32 %v1422, %v1249
      %v1424 = vadd.f32 %v1423, %v1250
      %v1425 = vadd.f32 %v1424, %v1251
      %v1426 = vadd.f32 %v1425, %v1252
      %v1427 = vadd.f32 %v1426, %v1253
      %v1428 = vadd.f32 %v1427, %v1254
      %v1429 = vadd.f32 %v1428, %v1255
      %v1430 = vrot.slane %v1429, 4
      %v1431 = vadd.f32 %v1429, %v1430
      %v1432 = vrot.slane %v1431, 2
      %v1433 = vadd.f32 %v1431, %v1432
      %v1434 = vrot.slane %v1433, 1
      %v1435 = vadd.f32 %v1433, %v1434
      %v1436 = vadd.f32 %v1256, %v1257
      %v1437 = vadd.f32 %v1436, %v1258
      %v1438 = vadd.f32 %v1437, %v1259
      %v1439 = vadd.f32 %v1438, %v1260
      %v1440 = vadd.f32 %v1439, %v1261
      %v1441 = vadd.f32 %v1440, %v1262
      %v1442 = vadd.f32 %v1441, %v1263
      %v1443 = vadd.f32 %v1442, %v1264
      %v1444 = vadd.f32 %v1443, %v1265
      %v1445 = vadd.f32 %v1444, %v1266
      %v1446 = vadd.f32 %v1445, %v1267
      %v1447 = vadd.f32 %v1446, %v1268
      %v1448 = vadd.f32 %v1447, %v1269
      %v1449 = vadd.f32 %v1448, %v1270
      %v1450 = vadd.f32 %v1449, %v1271
      %v1451 = vadd.f32 %v1450, %v1272
      %v1452 = vadd.f32 %v1451, %v1273
      %v1453 = vadd.f32 %v1452, %v1274
      %v1454 = vadd.f32 %v1453, %v1275
      %v1455 = vadd.f32 %v1454, %v1276
      %v1456 = vadd.f32 %v1455, %v1277
      %v1457 = vadd.f32 %v1456, %v1278
      %v1458 = vadd.f32 %v1457, %v1279
      %v1459 = vadd.f32 %v1458, %v1280
      %v1460 = vadd.f32 %v1459, %v1281
      %v1461 = vadd.f32 %v1460, %v1282
      %v1462 = vadd.f32 %v1461, %v1283
      %v1463 = vadd.f32 %v1462, %v1284
      %v1464 = vadd.f32 %v1463, %v1285
      %v1465 = vadd.f32 %v1464, %v1286
      %v1466 = vadd.f32 %v1465, %v1287
      %v1467 = vrot.slane %v1466, 4
      %v1468 = vadd.f32 %v1466, %v1467
      %v1469 = vrot.slane %v1468, 2
      %v1470 = vadd.f32 %v1468, %v1469
      %v1471 = vrot.slane %v1470, 1
      %v1472 = vadd.f32 %v1470, %v1471
      %v1473 = vrcp.pop 256.0
      %v1474 = vmul.f32 256.0, %v1473
      %v1475 = vsub.f32 1.0, %v1474
      %v1476 = vmul.f32 %v1473, %v1475
      %v1477 = vadd.f32 %v1473, %v1476
      %vm1478 = vweird.f32 %v1473
      %v1479 = vsel %vm1478, %v1473, %v1477
      %v1480 = vmul.f32 %v1324, %v1479
      %v1481 = vmul.f32 %v1361, %v1479
      %v1482 = vmul.f32 %v1398, %v1479
      %v1483 = vmul.f32 %v1435, %v1479
      %v1484 = vmul.f32 %v1472, %v1479
      %vm1490 = vcmask 1041409
      %v1491 = vsel %vm1490, %v1481, %v1480
      %vm1492 = vcmask 1042434
      %v1493 = vsel %vm1492, %v1482, %v1491
      %vm1494 = vcmask 1043459
      %v1495 = vsel %vm1494, %v1483, %v1493
      %vm1496 = vcmask 1044484
      %v1497 = vsel %vm1496, %v1484, %v1495
      %1499 = vst [vmem:[%s402] sm:$0x1f] %v1497
      %v1500 = vpack.c.bf16 %v1480, %v1480
      %v1501 = vpack.c.bf16 %v1481, %v1481
      %v1502 = vpack.c.bf16 %v1482, %v1482
      %v1503 = vpack.c.bf16 %v1483, %v1483
      %v1504 = vpack.c.bf16 %v1484, %v1484
      %v1505 = vld [vmem:[%s3] sm:$0xf]
      %v1506 = vld [vmem:[%s3 + $0x4] sm:$0xf]
      %v1507 = vld [vmem:[%s3 + $0x8] sm:$0xf]
      %v1508 = vld [vmem:[%s3 + $0xc] sm:$0xf]
      %v1509 = vld [vmem:[%s3 + $0x10] sm:$0xf]
      %v1510 = vld [vmem:[%s3 + $0x14] sm:$0xf]
      %v1511 = vld [vmem:[%s3 + $0x18] sm:$0xf]
      %v1512 = vld [vmem:[%s3 + $0x1c] sm:$0xf]
      %v1513 = vld [vmem:[%s3 + $0x20] sm:$0xf]
      %v1514 = vld [vmem:[%s3 + $0x24] sm:$0xf]
      %v1515 = vld [vmem:[%s3 + $0x28] sm:$0xf]
      %v1516 = vld [vmem:[%s3 + $0x2c] sm:$0xf]
      %v1517 = vld [vmem:[%s3 + $0x30] sm:$0xf]
      %v1518 = vld [vmem:[%s3 + $0x34] sm:$0xf]
      %v1519 = vld [vmem:[%s3 + $0x38] sm:$0xf]
      %v1520 = vld [vmem:[%s3 + $0x3c] sm:$0xf]
      %v1521 = vld [vmem:[%s4] sm:$0x1]
      %v1523 = vperm.slane %v1521, 0
      %v1530 = vunpack.c.l.b16 %v1500
      %v1531 = vunpack.c.l.b16 %v1501
      %v1532 = vunpack.c.l.b16 %v1502
      %v1533 = vunpack.c.l.b16 %v1503
      %v1534 = vunpack.c.l.b16 %v1504
      %v1535 = vsel %vm1490, %v1531, %v1530
      %v1536 = vsel %vm1492, %v1532, %v1535
      %v1537 = vsel %vm1494, %v1533, %v1536
      %v1538 = vsel %vm1496, %v1534, %v1537
      %v1539 = vpack.c.b16 %v1538, %v1538
      %v1557 = vunpack.c.l.b16 %v1505
      %v1558 = vunpack.c.l.b16 %v1506
      %v1559 = vunpack.c.l.b16 %v1507
      %v1560 = vunpack.c.l.b16 %v1508
      %v1561 = vunpack.c.l.b16 %v1509
      %v1562 = vunpack.c.l.b16 %v1510
      %v1563 = vunpack.c.l.b16 %v1511
      %v1564 = vunpack.c.l.b16 %v1512
      %v1565 = vunpack.c.l.b16 %v1513
      %v1566 = vunpack.c.l.b16 %v1514
      %v1567 = vunpack.c.l.b16 %v1515
      %v1568 = vunpack.c.l.b16 %v1516
      %v1569 = vunpack.c.l.b16 %v1517
      %v1570 = vunpack.c.l.b16 %v1518
      %v1571 = vunpack.c.l.b16 %v1519
      %v1572 = vunpack.c.l.b16 %v1520
      %v1573 = vpack.c.b16 %v1558, %v1557
      %v1574 = vpack.c.b16 %v1560, %v1559
      %v1575 = vpack.c.b16 %v1562, %v1561
      %v1576 = vpack.c.b16 %v1564, %v1563
      %v1577 = vpack.c.b16 %v1566, %v1565
      %v1578 = vpack.c.b16 %v1568, %v1567
      %v1579 = vpack.c.b16 %v1570, %v1569
      %v1580 = vpack.c.b16 %v1572, %v1571
      %1589 = vmatpush.bf16.msra.mxu0 %v1580
      %1590 = vmatpush.bf16.msra.mxu0 %v1579
      %1591 = vmatpush.bf16.msra.mxu0 %v1578
      %1592 = vmatpush.bf16.msra.mxu0 %v1577
      %1593 = vmatpush.bf16.msra.mxu0 %v1576
      %1594 = vmatpush.bf16.msra.mxu0 %v1575
      %1595 = vmatpush.bf16.msra.mxu0 %v1574
      %1596 = vmatpush.bf16.msra.mxu0 %v1573
      %1597 = vmatmul.bf16.gmra.mxu0 %v1539
      %v1598 = vpop.f32.mrf.mxu0
      %v1599 = vadd.f32 %v1523, %v1598
      %v1600 = vpop.f32.mrf.mxu0
      %1601 = vdwg.mxu0
      %1602 = vst [vmem:[%s406] sm:$0x1f] %v1599
      %v1603 = vld [vmem:[%s5] sm:$0xf]
      %v1604 = vld [vmem:[%s5 + $0x4] sm:$0xf]
      %v1605 = vld [vmem:[%s5 + $0x8] sm:$0xf]
      %v1606 = vld [vmem:[%s5 + $0xc] sm:$0xf]
      %v1607 = vld [vmem:[%s5 + $0x10] sm:$0xf]
      %v1608 = vld [vmem:[%s5 + $0x14] sm:$0xf]
      %v1609 = vld [vmem:[%s5 + $0x18] sm:$0xf]
      %v1610 = vld [vmem:[%s5 + $0x1c] sm:$0xf]
      %v1611 = vld [vmem:[%s5 + $0x20] sm:$0xf]
      %v1612 = vld [vmem:[%s5 + $0x24] sm:$0xf]
      %v1613 = vld [vmem:[%s5 + $0x28] sm:$0xf]
      %v1614 = vld [vmem:[%s5 + $0x2c] sm:$0xf]
      %v1615 = vld [vmem:[%s5 + $0x30] sm:$0xf]
      %v1616 = vld [vmem:[%s5 + $0x34] sm:$0xf]
      %v1617 = vld [vmem:[%s5 + $0x38] sm:$0xf]
      %v1618 = vld [vmem:[%s5 + $0x3c] sm:$0xf]
      %v1619 = vld [vmem:[%s6] sm:$0x1]
      %v1621 = vperm.slane %v1619, 0
      %v1639 = vunpack.c.l.b16 %v1603
      %v1640 = vunpack.c.l.b16 %v1604
      %v1641 = vunpack.c.l.b16 %v1605
      %v1642 = vunpack.c.l.b16 %v1606
      %v1643 = vunpack.c.l.b16 %v1607
      %v1644 = vunpack.c.l.b16 %v1608
      %v1645 = vunpack.c.l.b16 %v1609
      %v1646 = vunpack.c.l.b16 %v1610
      %v1647 = vunpack.c.l.b16 %v1611
      %v1648 = vunpack.c.l.b16 %v1612
      %v1649 = vunpack.c.l.b16 %v1613
      %v1650 = vunpack.c.l.b16 %v1614
      %v1651 = vunpack.c.l.b16 %v1615
      %v1652 = vunpack.c.l.b16 %v1616
      %v1653 = vunpack.c.l.b16 %v1617
      %v1654 = vunpack.c.l.b16 %v1618
      %v1655 = vpack.c.b16 %v1640, %v1639
      %v1656 = vpack.c.b16 %v1642, %v1641
      %v1657 = vpack.c.b16 %v1644, %v1643
      %v1658 = vpack.c.b16 %v1646, %v1645
      %v1659 = vpack.c.b16 %v1648, %v1647
      %v1660 = vpack.c.b16 %v1650, %v1649
      %v1661 = vpack.c.b16 %v1652, %v1651
      %v1662 = vpack.c.b16 %v1654, %v1653
      %1671 = vmatpush.bf16.msra.mxu0 %v1662
      %1672 = vmatpush.bf16.msra.mxu0 %v1661
      %1673 = vmatpush.bf16.msra.mxu0 %v1660
      %1674 = vmatpush.bf16.msra.mxu0 %v1659
      %1675 = vmatpush.bf16.msra.mxu0 %v1658
      %1676 = vmatpush.bf16.msra.mxu0 %v1657
      %1677 = vmatpush.bf16.msra.mxu0 %v1656
      %1678 = vmatpush.bf16.msra.mxu0 %v1655
      %1679 = vmatmul.bf16.gmra.mxu0 %v1539
      %v1680 = vpop.f32.mrf.mxu0
      %v1681 = vadd.f32 %v1621, %v1680
      %v1682 = vpop.f32.mrf.mxu0
      %1683 = vdwg.mxu0
      %v1684 = vmax.f32 %v1681, 0.0
      %v1685 = vpack.c.bf16 %v1684, %v1684
      %v1686 = vld [vmem:[%s7] sm:$0xf]
      %v1687 = vld [vmem:[%s7 + $0x4] sm:$0xf]
      %v1688 = vld [vmem:[%s7 + $0x8] sm:$0xf]
      %v1689 = vld [vmem:[%s7 + $0xc] sm:$0xf]
      %v1690 = vld [vmem:[%s7 + $0x10] sm:$0xf]
      %v1691 = vld [vmem:[%s7 + $0x14] sm:$0xf]
      %v1692 = vld [vmem:[%s7 + $0x18] sm:$0xf]
      %v1693 = vld [vmem:[%s7 + $0x1c] sm:$0xf]
      %v1694 = vld [vmem:[%s7 + $0x20] sm:$0xf]
      %v1695 = vld [vmem:[%s7 + $0x24] sm:$0xf]
      %v1696 = vld [vmem:[%s7 + $0x28] sm:$0xf]
      %v1697 = vld [vmem:[%s7 + $0x2c] sm:$0xf]
      %v1698 = vld [vmem:[%s7 + $0x30] sm:$0xf]
      %v1699 = vld [vmem:[%s7 + $0x34] sm:$0xf]
      %v1700 = vld [vmem:[%s7 + $0x38] sm:$0xf]
      %v1701 = vld [vmem:[%s7 + $0x3c] sm:$0xf]
      %v1702 = vld [vmem:[%s8] sm:$0x1]
      %v1704 = vperm.slane %v1702, 0
      %v1722 = vunpack.c.l.b16 %v1686
      %v1723 = vunpack.c.l.b16 %v1687
      %v1724 = vunpack.c.l.b16 %v1688
      %v1725 = vunpack.c.l.b16 %v1689
      %v1726 = vunpack.c.l.b16 %v1690
      %v1727 = vunpack.c.l.b16 %v1691
      %v1728 = vunpack.c.l.b16 %v1692
      %v1729 = vunpack.c.l.b16 %v1693
      %v1730 = vunpack.c.l.b16 %v1694
      %v1731 = vunpack.c.l.b16 %v1695
      %v1732 = vunpack.c.l.b16 %v1696
      %v1733 = vunpack.c.l.b16 %v1697
      %v1734 = vunpack.c.l.b16 %v1698
      %v1735 = vunpack.c.l.b16 %v1699
      %v1736 = vunpack.c.l.b16 %v1700
      %v1737 = vunpack.c.l.b16 %v1701
      %v1738 = vpack.c.b16 %v1723, %v1722
      %v1739 = vpack.c.b16 %v1725, %v1724
      %v1740 = vpack.c.b16 %v1727, %v1726
      %v1741 = vpack.c.b16 %v1729, %v1728
      %v1742 = vpack.c.b16 %v1731, %v1730
      %v1743 = vpack.c.b16 %v1733, %v1732
      %v1744 = vpack.c.b16 %v1735, %v1734
      %v1745 = vpack.c.b16 %v1737, %v1736
      %1754 = vmatpush.bf16.msra.mxu0 %v1745
      %1755 = vmatpush.bf16.msra.mxu0 %v1744
      %1756 = vmatpush.bf16.msra.mxu0 %v1743
      %1757 = vmatpush.bf16.msra.mxu0 %v1742
      %1758 = vmatpush.bf16.msra.mxu0 %v1741
      %1759 = vmatpush.bf16.msra.mxu0 %v1740
      %1760 = vmatpush.bf16.msra.mxu0 %v1739
      %1761 = vmatpush.bf16.msra.mxu0 %v1738
      %1762 = vmatmul.bf16.gmra.mxu0 %v1685
      %v1763 = vpop.f32.mrf.mxu0
      %v1764 = vadd.f32 %v1704, %v1763
      %v1765 = vpop.f32.mrf.mxu0
      %1766 = vdwg.mxu0
      %v1767 = vmul.f32 %v1764, %v1764
      %vm1768 = vcmask 1044480
      %v1769 = vsel %vm1768, %v1767, 0.0
      %1770 = vadd.xlane.f32.xlu0 %v1769
      %v1771 = vpop.xlane.xlu0 %1770
      %v1772 = vmax.f32 %v1771, 1e-24
      %v1773 = vrsqrt.pop %v1772
      %v1774 = vmul.f32 %v1773, %v1772
      %v1775 = vmul.f32 %v1774, %v1773
      %v1776 = vmul.f32 0.5, %v1775
      %v1777 = vsub.f32 1.5, %v1776
      %v1778 = vmul.f32 %v1773, %v1777
      %vm1779 = vweird.f32 %v1772
      %vm1780 = vweird.f32 %v1773
      %vm1781 = vmor %vm1779, %vm1780
      %v1782 = vsel %vm1781, %v1773, %v1778
      %v1783 = vmul.f32 %v1764, %v1782
      %1784 = vst [vmem:[%s410] sm:$0x1f] %v1783
      %p1785 = scmp.lt.s32.totalorder %s23, 1
      %s1786 = scalar_select %p1785, %s23, 1
      %s1787 = smul.addr %s1786, 8
      %s1788 = scalar_lea.vmem %s9, %s1787
      %p1789 = scmp.lt.s32.totalorder %s23, 1
      %s1790 = scalar_select %p1789, %s23, 1
      %s1791 = smul.addr %s1790, 8
      %s1792 = scalar_lea.vmem %s10, %s1791
      %p1793 = scmp.lt.s32.totalorder %s23, 1
      %s1794 = scalar_select %p1793, %s23, 1
      %s1795 = smul.addr %s1794, 8
      %s1796 = scalar_lea.vmem %s11, %s1795
      // Predicated region
      $region57: #{_lambda_.2} parent=55 // pred_check
        %p1797 = pneg %p235
      $region58: #{_lambda_.2} parent=55 // pred_check_branch
        %1799 = sbr.rel (%p1797) target = $region60
      $region59: #{_lambda_.2} parent=55 // pred_region
        _
      $region60: #{_lambda_.2} parent=55 // pred_fallthru
        _
      // Predicated region
      $region61: #{_lambda_.2} parent=55 // pred_check
        %p1800 = pneg %p261
      $region62: #{_lambda_.2} parent=55 // pred_check_branch
        %1802 = sbr.rel (%p1800) target = $region64
      $region63: #{_lambda_.2} parent=55 // pred_region
        _
      $region64: #{_lambda_.2} parent=55 // pred_fallthru
        _
      // Predicated region
      $region65: #{_lambda_.2} parent=55 // pred_check
        %p1803 = pneg %p287
      $region66: #{_lambda_.2} parent=55 // pred_check_branch
        %1805 = sbr.rel (%p1803) target = $region68
      $region67: #{_lambda_.2} parent=55 // pred_region
        _
      $region68: #{_lambda_.2} parent=55 // pred_fallthru
        _
    $region56: #{_lambda_.2} parent=5 // pred_fallthru
      _
    %p1806 = scmp.le.s32.totalorder 2, %s18
    // Predicated region
    $region69: #{_lambda_.2} parent=5 // pred_check
      %p1807 = pneg %p1806
    $region70: #{_lambda_.2} parent=5 // pred_check_branch
      %1809 = sbr.rel (%p1807) target = $region72
    $region71: #{_lambda_.2} parent=5 // pred_region
      %s1810 = ssub.s32 %s18, 2
      // Predicated region
      $region73: #{_lambda_.2} parent=71 // pred_check
        %p1811 = pneg %p241
      $region74: #{_lambda_.2} parent=71 // pred_check_branch
        %1813 = sbr.rel (%p1811) target = $region76
      $region75: #{_lambda_.2} parent=71 // pred_region
        %p1814 = scmp.lt.s32.totalorder %s24, 1
        %s1815 = scalar_select %p1814, %s24, 1
        %s1816 = smul.addr %s1815, 8
        %s1817 = scalar_lea.vmem %s9, %s1816
      $region76: #{_lambda_.2} parent=71 // pred_fallthru
        _
      // Predicated region
      $region77: #{_lambda_.2} parent=71 // pred_check
        %p1818 = pneg %p267
      $region78: #{_lambda_.2} parent=71 // pred_check_branch
        %1820 = sbr.rel (%p1818) target = $region80
      $region79: #{_lambda_.2} parent=71 // pred_region
        %p1821 = scmp.lt.s32.totalorder %s24, 1
        %s1822 = scalar_select %p1821, %s24, 1
        %s1823 = smul.addr %s1822, 8
        %s1824 = scalar_lea.vmem %s10, %s1823
      $region80: #{_lambda_.2} parent=71 // pred_fallthru
        _
      // Predicated region
      $region81: #{_lambda_.2} parent=71 // pred_check
        %p1825 = pneg %p293
      $region82: #{_lambda_.2} parent=71 // pred_check_branch
        %1827 = sbr.rel (%p1825) target = $region84
      $region83: #{_lambda_.2} parent=71 // pred_region
        %p1828 = scmp.lt.s32.totalorder %s24, 1
        %s1829 = scalar_select %p1828, %s24, 1
        %s1830 = smul.addr %s1829, 8
        %s1831 = scalar_lea.vmem %s11, %s1830
      $region84: #{_lambda_.2} parent=71 // pred_fallthru
        _
    $region72: #{_lambda_.2} parent=5 // pred_fallthru
      _
  $region6: #{_lambda_.2} parent=0 // loop_footer
    %s22 = sadd.s32 1, %s18
  $region7: #{_lambda_.2} parent=0 // loop_footer_branch
    %17 = sbr.rel target = $region3
  $region8: #{_lambda_.2} parent=0 // loop_exit
    _

// kernel: _lambda_.3
$region0: #{_lambda_.3}
  #allocation0 [shape = 'u32[]', space=smem, size = 0x4, offset = 0x4, fixed_abs, tag = 'smem constant byte address 0x4 - core index']
  #allocation1 [shape = 'u32[72,128]{1,0:T(1,128)}', space=vmem, size = 0x9000, scoped, tag = 'internal scratch']
  %s0 = inlined_call_operand.vmem [shape: s32[4,2,1], index: 0, kind: input, shape index: {}]
  %s1 = inlined_call_operand.vmem [shape: f32[8,128], index: 1, kind: input, shape index: {}]
  %s2 = inlined_call_operand.vmem [shape: bf16[128,128], index: 2, kind: input, shape index: {}]
  %s3 = inlined_call_operand.vmem [shape: f32[1,128], index: 3, kind: input, shape index: {}]
  %s4 = inlined_call_operand.vmem [shape: bf16[128,128], index: 4, kind: input, shape index: {}]
  %s5 = inlined_call_operand.vmem [shape: f32[1,128], index: 5, kind: input, shape index: {}]
  %s6 = inlined_call_operand.vmem [shape: bf16[4,128,128], index: 6, kind: input, shape index: {}]
  %s7 = inlined_call_operand.vmem [shape: f32[1,128], index: 7, kind: input, shape index: {}]
  %s8 = inlined_call_operand.hbm [shape: f32[2,128], index: 8, kind: output, shape index: {}]
  %s9 = sld [smem:[#allocation0]]
  $region42: #{_lambda_.3} parent=0
    _
  %s11 = ssub.s32 1, %s9
  %s12 = scalar_select 0, %s11, %s9
  $region1: #{_lambda_.3} parent=0
    #allocation2 [shape = 'u8[1024]{0}', space=vmem, size = 0x400, scoped, tag = 'output window, operand 0, single buffered']
    #allocation3 [shape = 's32[1]{0}', space=sflag, size = 0x4, scoped, tag = 'scoped memory for _lambda_.3']
    %13 = vsyncpa [#allocation3], 0
    // Predicated region
    $region2: #{_lambda_.3} parent=1 // pred_check
      _
    $region3: #{_lambda_.3} parent=1 // pred_check_branch
      %15 = sbr.rel (0) target = $region5
    $region4: #{_lambda_.3} parent=1 // pred_region
      _
    $region5: #{_lambda_.3} parent=1 // pred_fallthru
      _
    // Predicated region
    $region6: #{_lambda_.3} parent=1 // pred_check
      _
    $region7: #{_lambda_.3} parent=1 // pred_check_branch
      %17 = sbr.rel (0) target = $region9
    $region8: #{_lambda_.3} parent=1 // pred_region
      _
    $region9: #{_lambda_.3} parent=1 // pred_fallthru
      _
    // Predicated region
    $region10: #{_lambda_.3} parent=1 // pred_check
      _
    $region11: #{_lambda_.3} parent=1 // pred_check_branch
      %19 = sbr.rel (0) target = $region13
    $region12: #{_lambda_.3} parent=1 // pred_region
      _
    $region13: #{_lambda_.3} parent=1 // pred_fallthru
      _
    // Predicated region
    $region14: #{_lambda_.3} parent=1 // pred_check
      _
    $region15: #{_lambda_.3} parent=1 // pred_check_branch
      %21 = sbr.rel (0) target = $region17
    $region16: #{_lambda_.3} parent=1 // pred_region
      _
    $region17: #{_lambda_.3} parent=1 // pred_fallthru
      _
    // Predicated region
    $region18: #{_lambda_.3} parent=1 // pred_check
      _
    $region19: #{_lambda_.3} parent=1 // pred_check_branch
      %23 = sbr.rel (0) target = $region21
    $region20: #{_lambda_.3} parent=1 // pred_region
      _
    $region21: #{_lambda_.3} parent=1 // pred_fallthru
      _
    // Predicated region
    $region22: #{_lambda_.3} parent=1 // pred_check
      _
    $region23: #{_lambda_.3} parent=1 // pred_check_branch
      %25 = sbr.rel (0) target = $region25
    $region24: #{_lambda_.3} parent=1 // pred_region
      _
    $region25: #{_lambda_.3} parent=1 // pred_fallthru
      _
    // Predicated region
    $region26: #{_lambda_.3} parent=1 // pred_check
      _
    $region27: #{_lambda_.3} parent=1 // pred_check_branch
      %27 = sbr.rel (0) target = $region29
    $region28: #{_lambda_.3} parent=1 // pred_region
      _
    $region29: #{_lambda_.3} parent=1 // pred_fallthru
      _
    // Predicated region
    $region30: #{_lambda_.3} parent=1 // pred_check
      _
    $region31: #{_lambda_.3} parent=1 // pred_check_branch
      %29 = sbr.rel (0) target = $region33
    $region32: #{_lambda_.3} parent=1 // pred_region
      _
    $region33: #{_lambda_.3} parent=1 // pred_fallthru
      _
    %v31 = vld [vmem:[%s1] sm:$0xff]
    %v32 = vpack.c.bf16 %v31, %v31
    %v33 = vld [vmem:[%s2] sm:$0xf]
    %v34 = vld [vmem:[%s2 + $0x4] sm:$0xf]
    %v35 = vld [vmem:[%s2 + $0x8] sm:$0xf]
    %v36 = vld [vmem:[%s2 + $0xc] sm:$0xf]
    %v37 = vld [vmem:[%s2 + $0x10] sm:$0xf]
    %v38 = vld [vmem:[%s2 + $0x14] sm:$0xf]
    %v39 = vld [vmem:[%s2 + $0x18] sm:$0xf]
    %v40 = vld [vmem:[%s2 + $0x1c] sm:$0xf]
    %v41 = vld [vmem:[%s2 + $0x20] sm:$0xf]
    %v42 = vld [vmem:[%s2 + $0x24] sm:$0xf]
    %v43 = vld [vmem:[%s2 + $0x28] sm:$0xf]
    %v44 = vld [vmem:[%s2 + $0x2c] sm:$0xf]
    %v45 = vld [vmem:[%s2 + $0x30] sm:$0xf]
    %v46 = vld [vmem:[%s2 + $0x34] sm:$0xf]
    %v47 = vld [vmem:[%s2 + $0x38] sm:$0xf]
    %v48 = vld [vmem:[%s2 + $0x3c] sm:$0xf]
    %v49 = vld [vmem:[%s3] sm:$0x1]
    %v51 = vperm.slane %v49, 0
    %v69 = vunpack.c.l.b16 %v33
    %v70 = vunpack.c.l.b16 %v34
    %v71 = vunpack.c.l.b16 %v35
    %v72 = vunpack.c.l.b16 %v36
    %v73 = vunpack.c.l.b16 %v37
    %v74 = vunpack.c.l.b16 %v38
    %v75 = vunpack.c.l.b16 %v39
    %v76 = vunpack.c.l.b16 %v40
    %v77 = vunpack.c.l.b16 %v41
    %v78 = vunpack.c.l.b16 %v42
    %v79 = vunpack.c.l.b16 %v43
    %v80 = vunpack.c.l.b16 %v44
    %v81 = vunpack.c.l.b16 %v45
    %v82 = vunpack.c.l.b16 %v46
    %v83 = vunpack.c.l.b16 %v47
    %v84 = vunpack.c.l.b16 %v48
    %v85 = vpack.c.b16 %v70, %v69
    %v86 = vpack.c.b16 %v72, %v71
    %v87 = vpack.c.b16 %v74, %v73
    %v88 = vpack.c.b16 %v76, %v75
    %v89 = vpack.c.b16 %v78, %v77
    %v90 = vpack.c.b16 %v80, %v79
    %v91 = vpack.c.b16 %v82, %v81
    %v92 = vpack.c.b16 %v84, %v83
    %101 = vmatpush.bf16.msra.mxu0 %v92
    %102 = vmatpush.bf16.msra.mxu0 %v91
    %103 = vmatpush.bf16.msra.mxu0 %v90
    %104 = vmatpush.bf16.msra.mxu0 %v89
    %105 = vmatpush.bf16.msra.mxu0 %v88
    %106 = vmatpush.bf16.msra.mxu0 %v87
    %107 = vmatpush.bf16.msra.mxu0 %v86
    %108 = vmatpush.bf16.msra.mxu0 %v85
    %109 = vmatmul.bf16.gmra.mxu0 %v32
    %v110 = vpop.f32.mrf.mxu0
    %v111 = vadd.f32 %v51, %v110
    %v112 = vpop.f32.mrf.mxu0
    %113 = vdwg.mxu0
    %v114 = vmax.f32 %v111, 0.0
    %v115 = vpack.c.bf16 %v114, %v114
    %v116 = vld [vmem:[%s4] sm:$0xf]
    %v117 = vld [vmem:[%s4 + $0x4] sm:$0xf]
    %v118 = vld [vmem:[%s4 + $0x8] sm:$0xf]
    %v119 = vld [vmem:[%s4 + $0xc] sm:$0xf]
    %v120 = vld [vmem:[%s4 + $0x10] sm:$0xf]
    %v121 = vld [vmem:[%s4 + $0x14] sm:$0xf]
    %v122 = vld [vmem:[%s4 + $0x18] sm:$0xf]
    %v123 = vld [vmem:[%s4 + $0x1c] sm:$0xf]
    %v124 = vld [vmem:[%s4 + $0x20] sm:$0xf]
    %v125 = vld [vmem:[%s4 + $0x24] sm:$0xf]
    %v126 = vld [vmem:[%s4 + $0x28] sm:$0xf]
    %v127 = vld [vmem:[%s4 + $0x2c] sm:$0xf]
    %v128 = vld [vmem:[%s4 + $0x30] sm:$0xf]
    %v129 = vld [vmem:[%s4 + $0x34] sm:$0xf]
    %v130 = vld [vmem:[%s4 + $0x38] sm:$0xf]
    %v131 = vld [vmem:[%s4 + $0x3c] sm:$0xf]
    %v132 = vld [vmem:[%s5] sm:$0x1]
    %v134 = vperm.slane %v132, 0
    %v152 = vunpack.c.l.b16 %v116
    %v153 = vunpack.c.l.b16 %v117
    %v154 = vunpack.c.l.b16 %v118
    %v155 = vunpack.c.l.b16 %v119
    %v156 = vunpack.c.l.b16 %v120
    %v157 = vunpack.c.l.b16 %v121
    %v158 = vunpack.c.l.b16 %v122
    %v159 = vunpack.c.l.b16 %v123
    %v160 = vunpack.c.l.b16 %v124
    %v161 = vunpack.c.l.b16 %v125
    %v162 = vunpack.c.l.b16 %v126
    %v163 = vunpack.c.l.b16 %v127
    %v164 = vunpack.c.l.b16 %v128
    %v165 = vunpack.c.l.b16 %v129
    %v166 = vunpack.c.l.b16 %v130
    %v167 = vunpack.c.l.b16 %v131
    %v168 = vpack.c.b16 %v153, %v152
    %v169 = vpack.c.b16 %v155, %v154
    %v170 = vpack.c.b16 %v157, %v156
    %v171 = vpack.c.b16 %v159, %v158
    %v172 = vpack.c.b16 %v161, %v160
    %v173 = vpack.c.b16 %v163, %v162
    %v174 = vpack.c.b16 %v165, %v164
    %v175 = vpack.c.b16 %v167, %v166
    %184 = vmatpush.bf16.msra.mxu0 %v175
    %185 = vmatpush.bf16.msra.mxu0 %v174
    %186 = vmatpush.bf16.msra.mxu0 %v173
    %187 = vmatpush.bf16.msra.mxu0 %v172
    %188 = vmatpush.bf16.msra.mxu0 %v171
    %189 = vmatpush.bf16.msra.mxu0 %v170
    %190 = vmatpush.bf16.msra.mxu0 %v169
    %191 = vmatpush.bf16.msra.mxu0 %v168
    %192 = vmatmul.bf16.gmra.mxu0 %v115
    %v193 = vpop.f32.mrf.mxu0
    %v194 = vadd.f32 %v134, %v193
    %v195 = vpop.f32.mrf.mxu0
    %196 = vdwg.mxu0
    %v197 = vpack.c.bf16 %v194, %v194
    %v198 = vlaneseq
    %v199 = vand.u32 %v198, 127
    %v200 = vld [vmem:[%s0] sm:$0x3]
    %201 = vset.pattern.permute.xlu0 0
    %202 = vperm.xlu0 %201, %v200
    %v203 = vpop.permute.xlu0 %202
    %vm204 = vcmp.eq.s32.totalorder %v199, %v203
    %v205 = vsel %vm204, 1.0, 0.0
    %v206 = vpack.c.bf16 %v205, %v205
    %vm207 = vcmask 64512
    %v209 = vsel %vm207, %v206, 0
    %vm211 = vcmask 1043456
    %v213 = vsel %vm211, %v197, 0
    %215 = vmatpush.bf16.msra.mxu0 0
    %216 = vmatpush.bf16.msra.mxu0 0
    %217 = vmatpush.bf16.msra.mxu0 0
    %218 = vmatpush.bf16.msra.mxu0 0
    %219 = vmatpush.bf16.msra.mxu0 0
    %220 = vmatpush.bf16.msra.mxu0 0
    %221 = vmatpush.bf16.msra.mxu0 0
    %222 = vmatpush.bf16.msra.mxu0 %v213
    %223 = vmatmul.bf16.gmra.mxu0 %v209
    %v224 = vpop.f32.mrf.mxu0
    %v225 = vadd.f32 0.0, %v224
    %v226 = vpop.f32.mrf.mxu0
    %227 = vdwg.mxu0
    %v228 = vpack.c.bf16 %v225, %v225
    %v229 = vld [vmem:[%s6] sm:$0xf]
    %v230 = vld [vmem:[%s6 + $0x4] sm:$0xf]
    %v231 = vld [vmem:[%s6 + $0x8] sm:$0xf]
    %v232 = vld [vmem:[%s6 + $0xc] sm:$0xf]
    %v233 = vld [vmem:[%s6 + $0x10] sm:$0xf]
    %v234 = vld [vmem:[%s6 + $0x14] sm:$0xf]
    %v235 = vld [vmem:[%s6 + $0x18] sm:$0xf]
    %v236 = vld [vmem:[%s6 + $0x1c] sm:$0xf]
    %v237 = vld [vmem:[%s6 + $0x20] sm:$0xf]
    %v238 = vld [vmem:[%s6 + $0x24] sm:$0xf]
    %v239 = vld [vmem:[%s6 + $0x28] sm:$0xf]
    %v240 = vld [vmem:[%s6 + $0x2c] sm:$0xf]
    %v241 = vld [vmem:[%s6 + $0x30] sm:$0xf]
    %v242 = vld [vmem:[%s6 + $0x34] sm:$0xf]
    %v243 = vld [vmem:[%s6 + $0x38] sm:$0xf]
    %v244 = vld [vmem:[%s6 + $0x3c] sm:$0xf]
    %s245 = scalar_lea.vmem %s0, 2
    %v246 = vld [vmem:[%s245] sm:$0x3]
    %247 = vset.pattern.permute.xlu0 0
    %248 = vperm.xlu0 %247, %v246
    %v249 = vpop.permute.xlu0 %248
    %vm250 = vcmp.eq.s32.totalorder %v199, %v249
    %v251 = vsel %vm250, 1.0, 0.0
    %v252 = vpack.c.bf16 %v251, %v251
    %v254 = vsel %vm207, %v252, 0
    %256 = vmatpush.bf16.msra.mxu0 0
    %257 = vmatpush.bf16.msra.mxu0 0
    %258 = vmatpush.bf16.msra.mxu0 0
    %259 = vmatpush.bf16.msra.mxu0 0
    %260 = vmatpush.bf16.msra.mxu0 0
    %261 = vmatpush.bf16.msra.mxu0 0
    %262 = vmatpush.bf16.msra.mxu0 0
    %263 = vmatpush.bf16.msra.mxu0 %v213
    %264 = vmatmul.bf16.gmra.mxu0 %v254
    %v265 = vpop.f32.mrf.mxu0
    %v266 = vadd.f32 0.0, %v265
    %v267 = vpop.f32.mrf.mxu0
    %268 = vdwg.mxu0
    %v269 = vpack.c.bf16 %v266, %v266
    %s270 = scalar_lea.vmem %s6, 64
    %v271 = vld [vmem:[%s270] sm:$0xf]
    %v272 = vld [vmem:[%s270 + $0x4] sm:$0xf]
    %v273 = vld [vmem:[%s270 + $0x8] sm:$0xf]
    %v274 = vld [vmem:[%s270 + $0xc] sm:$0xf]
    %v275 = vld [vmem:[%s270 + $0x10] sm:$0xf]
    %v276 = vld [vmem:[%s270 + $0x14] sm:$0xf]
    %v277 = vld [vmem:[%s270 + $0x18] sm:$0xf]
    %v278 = vld [vmem:[%s270 + $0x1c] sm:$0xf]
    %v279 = vld [vmem:[%s270 + $0x20] sm:$0xf]
    %v280 = vld [vmem:[%s270 + $0x24] sm:$0xf]
    %v281 = vld [vmem:[%s270 + $0x28] sm:$0xf]
    %v282 = vld [vmem:[%s270 + $0x2c] sm:$0xf]
    %v283 = vld [vmem:[%s270 + $0x30] sm:$0xf]
    %v284 = vld [vmem:[%s270 + $0x34] sm:$0xf]
    %v285 = vld [vmem:[%s270 + $0x38] sm:$0xf]
    %v286 = vld [vmem:[%s270 + $0x3c] sm:$0xf]
    %v303 = vunpack.c.l.b16 %v271
    %v304 = vunpack.c.l.b16 %v272
    %v305 = vunpack.c.l.b16 %v273
    %v306 = vunpack.c.l.b16 %v274
    %v307 = vunpack.c.l.b16 %v275
    %v308 = vunpack.c.l.b16 %v276
    %v309 = vunpack.c.l.b16 %v277
    %v310 = vunpack.c.l.b16 %v278
    %v311 = vunpack.c.l.b16 %v279
    %v312 = vunpack.c.l.b16 %v280
    %v313 = vunpack.c.l.b16 %v281
    %v314 = vunpack.c.l.b16 %v282
    %v315 = vunpack.c.l.b16 %v283
    %v316 = vunpack.c.l.b16 %v284
    %v317 = vunpack.c.l.b16 %v285
    %v318 = vunpack.c.l.b16 %v286
    %v319 = vpack.c.b16 %v304, %v303
    %v320 = vpack.c.b16 %v306, %v305
    %v321 = vpack.c.b16 %v308, %v307
    %v322 = vpack.c.b16 %v310, %v309
    %v323 = vpack.c.b16 %v312, %v311
    %v324 = vpack.c.b16 %v314, %v313
    %v325 = vpack.c.b16 %v316, %v315
    %v326 = vpack.c.b16 %v318, %v317
    %335 = vmatpush.bf16.msra.mxu0 %v326
    %336 = vmatpush.bf16.msra.mxu0 %v325
    %337 = vmatpush.bf16.msra.mxu0 %v324
    %338 = vmatpush.bf16.msra.mxu0 %v323
    %339 = vmatpush.bf16.msra.mxu0 %v322
    %340 = vmatpush.bf16.msra.mxu0 %v321
    %341 = vmatpush.bf16.msra.mxu0 %v320
    %342 = vmatpush.bf16.msra.mxu0 %v319
    %343 = vmatmul.bf16.gmra.mxu0 %v269
    %v344 = vpop.f32.mrf.mxu0
    %v345 = vadd.f32 0.0, %v344
    %v346 = vpop.f32.mrf.mxu0
    %347 = vdwg.mxu0
    %v364 = vunpack.c.l.b16 %v229
    %v365 = vunpack.c.l.b16 %v230
    %v366 = vunpack.c.l.b16 %v231
    %v367 = vunpack.c.l.b16 %v232
    %v368 = vunpack.c.l.b16 %v233
    %v369 = vunpack.c.l.b16 %v234
    %v370 = vunpack.c.l.b16 %v235
    %v371 = vunpack.c.l.b16 %v236
    %v372 = vunpack.c.l.b16 %v237
    %v373 = vunpack.c.l.b16 %v238
    %v374 = vunpack.c.l.b16 %v239
    %v375 = vunpack.c.l.b16 %v240
    %v376 = vunpack.c.l.b16 %v241
    %v377 = vunpack.c.l.b16 %v242
    %v378 = vunpack.c.l.b16 %v243
    %v379 = vunpack.c.l.b16 %v244
    %v380 = vpack.c.b16 %v365, %v364
    %v381 = vpack.c.b16 %v367, %v366
    %v382 = vpack.c.b16 %v369, %v368
    %v383 = vpack.c.b16 %v371, %v370
    %v384 = vpack.c.b16 %v373, %v372
    %v385 = vpack.c.b16 %v375, %v374
    %v386 = vpack.c.b16 %v377, %v376
    %v387 = vpack.c.b16 %v379, %v378
    %396 = vmatpush.bf16.msra.mxu0 %v387
    %397 = vmatpush.bf16.msra.mxu0 %v386
    %398 = vmatpush.bf16.msra.mxu0 %v385
    %399 = vmatpush.bf16.msra.mxu0 %v384
    %400 = vmatpush.bf16.msra.mxu0 %v383
    %401 = vmatpush.bf16.msra.mxu0 %v382
    %402 = vmatpush.bf16.msra.mxu0 %v381
    %403 = vmatpush.bf16.msra.mxu0 %v380
    %404 = vmatmul.bf16.gmra.mxu0 %v228
    %v405 = vpop.f32.mrf.mxu0
    %v406 = vadd.f32 %v345, %v405
    %v407 = vpop.f32.mrf.mxu0
    %408 = vdwg.mxu0
    %s409 = scalar_lea.vmem %s0, 4
    %v410 = vld [vmem:[%s409] sm:$0x3]
    %411 = vset.pattern.permute.xlu0 0
    %412 = vperm.xlu0 %411, %v410
    %v413 = vpop.permute.xlu0 %412
    %vm414 = vcmp.eq.s32.totalorder %v199, %v413
    %v415 = vsel %vm414, 1.0, 0.0
    %v416 = vpack.c.bf16 %v415, %v415
    %v418 = vsel %vm207, %v416, 0
    %420 = vmatpush.bf16.msra.mxu0 0
    %421 = vmatpush.bf16.msra.mxu0 0
    %422 = vmatpush.bf16.msra.mxu0 0
    %423 = vmatpush.bf16.msra.mxu0 0
    %424 = vmatpush.bf16.msra.mxu0 0
    %425 = vmatpush.bf16.msra.mxu0 0
    %426 = vmatpush.bf16.msra.mxu0 0
    %427 = vmatpush.bf16.msra.mxu0 %v213
    %428 = vmatmul.bf16.gmra.mxu0 %v418
    %v429 = vpop.f32.mrf.mxu0
    %v430 = vadd.f32 0.0, %v429
    %v431 = vpop.f32.mrf.mxu0
    %432 = vdwg.mxu0
    %v433 = vpack.c.bf16 %v430, %v430
    %s434 = scalar_lea.vmem %s6, 128
    %v435 = vld [vmem:[%s434] sm:$0xf]
    %v436 = vld [vmem:[%s434 + $0x4] sm:$0xf]
    %v437 = vld [vmem:[%s434 + $0x8] sm:$0xf]
    %v438 = vld [vmem:[%s434 + $0xc] sm:$0xf]
    %v439 = vld [vmem:[%s434 + $0x10] sm:$0xf]
    %v440 = vld [vmem:[%s434 + $0x14] sm:$0xf]
    %v441 = vld [vmem:[%s434 + $0x18] sm:$0xf]
    %v442 = vld [vmem:[%s434 + $0x1c] sm:$0xf]
    %v443 = vld [vmem:[%s434 + $0x20] sm:$0xf]
    %v444 = vld [vmem:[%s434 + $0x24] sm:$0xf]
    %v445 = vld [vmem:[%s434 + $0x28] sm:$0xf]
    %v446 = vld [vmem:[%s434 + $0x2c] sm:$0xf]
    %v447 = vld [vmem:[%s434 + $0x30] sm:$0xf]
    %v448 = vld [vmem:[%s434 + $0x34] sm:$0xf]
    %v449 = vld [vmem:[%s434 + $0x38] sm:$0xf]
    %v450 = vld [vmem:[%s434 + $0x3c] sm:$0xf]
    %v467 = vunpack.c.l.b16 %v435
    %v468 = vunpack.c.l.b16 %v436
    %v469 = vunpack.c.l.b16 %v437
    %v470 = vunpack.c.l.b16 %v438
    %v471 = vunpack.c.l.b16 %v439
    %v472 = vunpack.c.l.b16 %v440
    %v473 = vunpack.c.l.b16 %v441
    %v474 = vunpack.c.l.b16 %v442
    %v475 = vunpack.c.l.b16 %v443
    %v476 = vunpack.c.l.b16 %v444
    %v477 = vunpack.c.l.b16 %v445
    %v478 = vunpack.c.l.b16 %v446
    %v479 = vunpack.c.l.b16 %v447
    %v480 = vunpack.c.l.b16 %v448
    %v481 = vunpack.c.l.b16 %v449
    %v482 = vunpack.c.l.b16 %v450
    %v483 = vpack.c.b16 %v468, %v467
    %v484 = vpack.c.b16 %v470, %v469
    %v485 = vpack.c.b16 %v472, %v471
    %v486 = vpack.c.b16 %v474, %v473
    %v487 = vpack.c.b16 %v476, %v475
    %v488 = vpack.c.b16 %v478, %v477
    %v489 = vpack.c.b16 %v480, %v479
    %v490 = vpack.c.b16 %v482, %v481
    %499 = vmatpush.bf16.msra.mxu0 %v490
    %500 = vmatpush.bf16.msra.mxu0 %v489
    %501 = vmatpush.bf16.msra.mxu0 %v488
    %502 = vmatpush.bf16.msra.mxu0 %v487
    %503 = vmatpush.bf16.msra.mxu0 %v486
    %504 = vmatpush.bf16.msra.mxu0 %v485
    %505 = vmatpush.bf16.msra.mxu0 %v484
    %506 = vmatpush.bf16.msra.mxu0 %v483
    %507 = vmatmul.bf16.gmra.mxu0 %v433
    %v508 = vpop.f32.mrf.mxu0
    %v509 = vadd.f32 0.0, %v508
    %v510 = vpop.f32.mrf.mxu0
    %511 = vdwg.mxu0
    %v512 = vadd.f32 %v406, %v509
    %s513 = scalar_lea.vmem %s0, 6
    %v514 = vld [vmem:[%s513] sm:$0x3]
    %515 = vset.pattern.permute.xlu0 0
    %516 = vperm.xlu0 %515, %v514
    %v517 = vpop.permute.xlu0 %516
    %vm518 = vcmp.eq.s32.totalorder %v199, %v517
    %v519 = vsel %vm518, 1.0, 0.0
    %v520 = vpack.c.bf16 %v519, %v519
    %v522 = vsel %vm207, %v520, 0
    %524 = vmatpush.bf16.msra.mxu0 0
    %525 = vmatpush.bf16.msra.mxu0 0
    %526 = vmatpush.bf16.msra.mxu0 0
    %527 = vmatpush.bf16.msra.mxu0 0
    %528 = vmatpush.bf16.msra.mxu0 0
    %529 = vmatpush.bf16.msra.mxu0 0
    %530 = vmatpush.bf16.msra.mxu0 0
    %531 = vmatpush.bf16.msra.mxu0 %v213
    %532 = vmatmul.bf16.gmra.mxu0 %v522
    %v533 = vpop.f32.mrf.mxu0
    %v534 = vadd.f32 0.0, %v533
    %v535 = vpop.f32.mrf.mxu0
    %536 = vdwg.mxu0
    %v537 = vpack.c.bf16 %v534, %v534
    %s538 = scalar_lea.vmem %s6, 192
    %v539 = vld [vmem:[%s538] sm:$0xf]
    %v540 = vld [vmem:[%s538 + $0x4] sm:$0xf]
    %v541 = vld [vmem:[%s538 + $0x8] sm:$0xf]
    %v542 = vld [vmem:[%s538 + $0xc] sm:$0xf]
    %v543 = vld [vmem:[%s538 + $0x10] sm:$0xf]
    %v544 = vld [vmem:[%s538 + $0x14] sm:$0xf]
    %v545 = vld [vmem:[%s538 + $0x18] sm:$0xf]
    %v546 = vld [vmem:[%s538 + $0x1c] sm:$0xf]
    %v547 = vld [vmem:[%s538 + $0x20] sm:$0xf]
    %v548 = vld [vmem:[%s538 + $0x24] sm:$0xf]
    %v549 = vld [vmem:[%s538 + $0x28] sm:$0xf]
    %v550 = vld [vmem:[%s538 + $0x2c] sm:$0xf]
    %v551 = vld [vmem:[%s538 + $0x30] sm:$0xf]
    %v552 = vld [vmem:[%s538 + $0x34] sm:$0xf]
    %v553 = vld [vmem:[%s538 + $0x38] sm:$0xf]
    %v554 = vld [vmem:[%s538 + $0x3c] sm:$0xf]
    %v571 = vunpack.c.l.b16 %v539
    %v572 = vunpack.c.l.b16 %v540
    %v573 = vunpack.c.l.b16 %v541
    %v574 = vunpack.c.l.b16 %v542
    %v575 = vunpack.c.l.b16 %v543
    %v576 = vunpack.c.l.b16 %v544
    %v577 = vunpack.c.l.b16 %v545
    %v578 = vunpack.c.l.b16 %v546
    %v579 = vunpack.c.l.b16 %v547
    %v580 = vunpack.c.l.b16 %v548
    %v581 = vunpack.c.l.b16 %v549
    %v582 = vunpack.c.l.b16 %v550
    %v583 = vunpack.c.l.b16 %v551
    %v584 = vunpack.c.l.b16 %v552
    %v585 = vunpack.c.l.b16 %v553
    %v586 = vunpack.c.l.b16 %v554
    %v587 = vpack.c.b16 %v572, %v571
    %v588 = vpack.c.b16 %v574, %v573
    %v589 = vpack.c.b16 %v576, %v575
    %v590 = vpack.c.b16 %v578, %v577
    %v591 = vpack.c.b16 %v580, %v579
    %v592 = vpack.c.b16 %v582, %v581
    %v593 = vpack.c.b16 %v584, %v583
    %v594 = vpack.c.b16 %v586, %v585
    %603 = vmatpush.bf16.msra.mxu0 %v594
    %604 = vmatpush.bf16.msra.mxu0 %v593
    %605 = vmatpush.bf16.msra.mxu0 %v592
    %606 = vmatpush.bf16.msra.mxu0 %v591
    %607 = vmatpush.bf16.msra.mxu0 %v590
    %608 = vmatpush.bf16.msra.mxu0 %v589
    %609 = vmatpush.bf16.msra.mxu0 %v588
    %610 = vmatpush.bf16.msra.mxu0 %v587
    %611 = vmatmul.bf16.gmra.mxu0 %v537
    %v612 = vpop.f32.mrf.mxu0
    %v613 = vadd.f32 0.0, %v612
    %v614 = vpop.f32.mrf.mxu0
    %615 = vdwg.mxu0
    %v616 = vadd.f32 %v512, %v613
    %v617 = vld [vmem:[%s7] sm:$0x1]
    %v619 = vperm.slane %v617, 0
    %v621 = vadd.f32 %v616, %v619
    %v622 = vmul.f32 %v621, %v621
    %vm623 = vcmask 1041408
    %v624 = vsel %vm623, %v622, 0.0
    %625 = vadd.xlane.f32.xlu0 %v624
    %v626 = vpop.xlane.xlu0 %625
    %v627 = vmax.f32 %v626, 1e-24
    %v628 = vrsqrt.pop %v627
    %v629 = vmul.f32 %v628, %v627
    %v630 = vmul.f32 %v629, %v628
    %v631 = vmul.f32 0.5, %v630
    %v632 = vsub.f32 1.5, %v631
    %v633 = vmul.f32 %v628, %v632
    %vm634 = vweird.f32 %v627
    %vm635 = vweird.f32 %v628
    %vm636 = vmor %vm634, %vm635
    %v637 = vsel %vm636, %v628, %v633
    %v638 = vmul.f32 %v621, %v637
    %639 = vst [vmem:[#allocation2] sm:$0x3] %v638
    // Predicated region
    $region34: #{_lambda_.3} parent=1 // pred_check
      _
    $region35: #{_lambda_.3} parent=1 // pred_check_branch
      %641 = sbr.rel (0) target = $region37
    $region36: #{_lambda_.3} parent=1 // pred_region
      %643 = vsyncadd [#allocation3], 0
      %s645 = sshll.u32 [#allocation2], 4
      %s646 = int_to_ptr.vmem [resolvable:$true] %s645
      %s647 = sshll.u32 %s8, 4
      %s648 = int_to_ptr.hbm [resolvable:$true] %s647
      %650 = dma.vmem_to_hbm [thread:$0]  %s646, 32, %s648, [#allocation3]
    $region37: #{_lambda_.3} parent=1 // pred_fallthru
      _
    // Predicated region
    $region38: #{_lambda_.3} parent=1 // pred_check
      _
    $region39: #{_lambda_.3} parent=1 // pred_check_branch
      %652 = sbr.rel (0) target = $region41
    $region40: #{_lambda_.3} parent=1 // pred_region
      %654 = dma.done [#allocation3], 32
    $region41: #{_lambda_.3} parent=1 // pred_fallthru
      _
    %655 = vsyncpa [#allocation3], 1

</llo_original>
